<compile_context>
chip_gen: v6e
topology: v6e:2x2x1
jax: 0.10.0
libtpu: 0.0.40
codegen_flags: <defaults>
</compile_context>

<pallas_src>
import functools

import jax
import jax.numpy as jnp
from jax.experimental import pallas as pl
from jax.experimental.pallas import tpu as pltpu


# ----------------------------------------------------------------------------
# Fused kernel (one grid step per batch element, sequential / "arbitrary").
#   rgb_hbm, tir_hbm : (B, C, H*W) bf16, raw HBM refs (memory_space=pl.ANY)
#   w3_ref           : (2, 9, Cmid, C) bf16  [modality, tap, out_ch, in_ch]
#   scale_ref/bias_ref : (Cmid, 1) f32       folded eval-mode BatchNorm
#   wh_ref           : (4A, Cmid) bf16       rows = [off_x | off_y | cf_x | cf_y]
#   bh_ref           : (4A, 1) f32
#   out_ref          : (1, 5A, H*W) f32      [off_x | off_y | cf_x | cf_y | mask]
#   xrgb, xtir       : VMEM (2, C, front + H*W + back) bf16, double-buffered
#                      zero-halo'd activation scratch
#   sem              : DMA semaphores (2 slots x 2 modalities)
# ----------------------------------------------------------------------------
def _abam_fused_kernel(rgb_hbm, tir_hbm, w3_ref, scale_ref, bias_ref,
                       wh_ref, bh_ref, out_ref, xrgb, xtir, sem,
                       *, C, H, W, A, front, thres):
    HW = H * W
    width = xrgb.shape[2]
    back = width - front - HW

    b = pl.program_id(0)
    nb = pl.num_programs(0)
    slot = b % 2

    def copies(bi, s):
        # Straight HBM -> padded-VMEM-interior DMAs (no VMEM->VMEM re-copy).
        return (
            pltpu.make_async_copy(rgb_hbm.at[bi],
                                  xrgb.at[s, :, front:front + HW],
                                  sem.at[s, 0]),
            pltpu.make_async_copy(tir_hbm.at[bi],
                                  xtir.at[s, :, front:front + HW],
                                  sem.at[s, 1]),
        )

    # Prime slot 0 and zero the persistent halo strips exactly once.
    @pl.when(b == 0)
    def _prime():
        for cp in copies(0, 0):
            cp.start()
        zf = jnp.zeros((2, C, front), xrgb.dtype)
        zb = jnp.zeros((2, C, back), xrgb.dtype)
        xrgb[:, :, 0:front] = zf
        xrgb[:, :, front + HW:width] = zb
        xtir[:, :, 0:front] = zf
        xtir[:, :, front + HW:width] = zb

    # Manual double-buffering: prefetch batch b+1 into the other slot.
    @pl.when(b + 1 < nb)
    def _prefetch():
        for cp in copies(b + 1, (b + 1) % 2):
            cp.start()

    # Lane masks for the horizontal wrap of the flattened (h*W + w) layout.
    # Only (1, HW): broadcast over channels in jnp.where.
    col = jax.lax.broadcasted_iota(jnp.int32, (1, HW), 1) % W
    not_left = col != 0          # tap reads w-1: invalid at w == 0
    not_right = col != (W - 1)   # tap reads w+1: invalid at w == W-1

    # Wait for the current slot's activations.
    for cp in copies(b, slot):
        cp.wait()

    xr = xrgb.at[slot]
    xt = xtir.at[slot]

    # shared_conv 3x3: nine accumulated per-tap matmuls (no im2col slab).
    # Vertical out-of-range taps read the zero halo; horizontal wrap is
    # masked on the (Cmid, HW) contribution (cheaper than masking (2C, HW)).
    acc = None
    t = 0
    for dy in (-1, 0, 1):
        for dx in (-1, 0, 1):
            off = front + dy * W + dx            # static offset into scratch
            contrib = jnp.dot(w3_ref[0, t], xr[:, off:off + HW],
                              preferred_element_type=jnp.float32)
            contrib = contrib + jnp.dot(w3_ref[1, t], xt[:, off:off + HW],
                                        preferred_element_type=jnp.float32)
            if dx == -1:
                contrib = jnp.where(not_left, contrib, 0.0)
            elif dx == 1:
                contrib = jnp.where(not_right, contrib, 0.0)
            acc = contrib if acc is None else acc + contrib
            t += 1

    # Folded eval-mode BN + ReLU, kept in f32 (no bf16 VPU on v5e).
    shared = jnp.maximum(acc * scale_ref[...] + bias_ref[...], 0.0)  # (Cmid,HW)

    # Offset + confidence heads fused into one (4A, Cmid) @ (Cmid, HW) matmul.
    head = jnp.dot(wh_ref[...], shared.astype(wh_ref.dtype),
                   preferred_element_type=jnp.float32) + bh_ref[...]  # (4A,HW)

    # Direct slice stores (no concatenated (5A, HW) temporary).
    out_ref[0, 0:2 * A] = head[0:2 * A]                       # raw offsets
    out_ref[0, 2 * A:4 * A] = jax.nn.sigmoid(head[2 * A:4 * A])  # confidences
    offx = head[0:A]
    offy = head[A:2 * A]
    # ||off|| < t  <=>  off_x^2 + off_y^2 < t^2  (sqrt dropped).
    out_ref[0, 4 * A:5 * A] = ((offx * offx + offy * offy) <
                               (thres * thres)).astype(jnp.float32)


# ----------------------------------------------------------------------------
# One-off weight repacking / BN folding (call at model init, not per forward).
# ----------------------------------------------------------------------------
def prepare_params(params, *, num_anchors=9):
    w3 = params["w3"]                        # (3, 3, 2C, Cmid), HWIO
    Cin, Cmid = w3.shape[2], w3.shape[3]
    C = Cin // 2
    A = num_anchors

    # (2, 9, Cmid, C): [modality, tap, out_ch, in_ch]; taps row-major (ky, kx).
    w3p = jnp.transpose(w3.reshape(3, 3, 2, C, Cmid),
                        (2, 0, 1, 4, 3)).reshape(2, 9, Cmid, C)
    w3p = w3p.astype(jnp.bfloat16)

    # Fold eval-mode BatchNorm into per-channel scale / bias.
    # TODO(synk): train-mode BN (batch statistics) is not supported here.
    eps = 1e-5
    scale = params["bn_gamma"] / jnp.sqrt(params["bn_var"] + eps)
    bias = params["bn_beta"] - params["bn_mean"] * scale

    # Merge both 1x1 heads into one (4A, Cmid) matmul; the even/odd column
    # split matches PyTorch's .view(B, A, 2, H, W) channel interleave.
    w_off, b_off = params["w_off"], params["b_off"]   # (Cmid, 2A), (2A,)
    w_cf, b_cf = params["w_cf"], params["b_cf"]
    wh = jnp.concatenate([w_off[:, 0::2].T, w_off[:, 1::2].T,
                          w_cf[:, 0::2].T, w_cf[:, 1::2].T],
                         axis=0).astype(jnp.bfloat16)               # (4A,Cmid)
    bh = jnp.concatenate([b_off[0::2], b_off[1::2],
                          b_cf[0::2], b_cf[1::2]],
                         axis=0).reshape(4 * A, 1).astype(jnp.float32)

    return {
        "w3p": w3p,
        "scale": scale.reshape(Cmid, 1).astype(jnp.float32),
        "bias": bias.reshape(Cmid, 1).astype(jnp.float32),
        "wh": wh,
        "bh": bh,
    }


# ----------------------------------------------------------------------------
# Forward wrapper: single pallas_call + cheap unpacking of the lane-dense
# output slab back to PyTorch layouts.
# ----------------------------------------------------------------------------
def anchor_box_alignment(rgb_feat, tir_feat, packed, *, num_anchors=9,
                         align_thres=0.5):
    B, C, H, W = rgb_feat.shape
    A = num_anchors
    Cmid = packed["w3p"].shape[2]
    HW = H * W

    LANE = 128
    front = ((W + 1 + LANE - 1) // LANE) * LANE   # lane-aligned halo
    back = front
    width = front + HW + back

    # Flat NC(HW) views; bf16 halves HBM DMA bytes.  In production the
    # upstream layer should emit bf16 directly (this cast is example-only).
    rgb = rgb_feat.reshape(B, C, HW).astype(jnp.bfloat16)
    tir = tir_feat.reshape(B, C, HW).astype(jnp.bfloat16)

    kernel = functools.partial(_abam_fused_kernel, C=C, H=H, W=W, A=A,
                               front=front, thres=float(align_thres))

    packed_out = pl.pallas_call(
        kernel,
        out_shape=jax.ShapeDtypeStruct((B, 5 * A, HW), jnp.float32),
        grid=(B,),
        in_specs=[
            pl.BlockSpec(memory_space=pl.ANY),                       # rgb (HBM)
            pl.BlockSpec(memory_space=pl.ANY),                       # tir (HBM)
            pl.BlockSpec((2, 9, Cmid, C), lambda b: (0, 0, 0, 0)),   # w3p
            pl.BlockSpec((Cmid, 1), lambda b: (0, 0)),               # scale
            pl.BlockSpec((Cmid, 1), lambda b: (0, 0)),               # bias
            pl.BlockSpec((4 * A, Cmid), lambda b: (0, 0)),           # wh
            pl.BlockSpec((4 * A, 1), lambda b: (0, 0)),              # bh
        ],
        out_specs=pl.BlockSpec((1, 5 * A, HW), lambda b: (b, 0, 0)),
        scratch_shapes=[
            pltpu.VMEM((2, C, width), jnp.bfloat16),   # rgb slots (padded)
            pltpu.VMEM((2, C, width), jnp.bfloat16),   # tir slots (padded)
            pltpu.SemaphoreType.DMA((2, 2)),           # [slot, modality]
        ],
        # Batch axis must be sequential: the scratch halo is zeroed once and
        # the manual double-buffer prefetches b+1 from step b.
        compiler_params=pltpu.CompilerParams(
            dimension_semantics=("arbitrary",),
            vmem_limit_bytes=32 * 1024 * 1024),
    )(rgb, tir, packed["w3p"], packed["scale"], packed["bias"],
      packed["wh"], packed["bh"])

    # Unpack the lane-dense slab back to PyTorch conventions (tiny tensors).
    offsets = jnp.transpose(
        packed_out[:, :2 * A].reshape(B, 2, A, H, W), (0, 2, 1, 3, 4))
    confidences = jnp.transpose(
        packed_out[:, 2 * A:4 * A].reshape(B, 2, A, H, W), (0, 2, 1, 3, 4))
    alignment_mask = packed_out[:, 4 * A:].reshape(B, A, H, W)
    return offsets, confidences, alignment_mask


# ----------------------------------------------------------------------------
# Pure-JAX reference (mirrors the PyTorch forward) for a correctness check.
# ----------------------------------------------------------------------------
def reference(rgb_feat, tir_feat, params, *, num_anchors=9, align_thres=0.5):
    B, C, H, W = rgb_feat.shape
    A = num_anchors
    x = jnp.concatenate([rgb_feat, tir_feat], axis=1)
    x = jnp.transpose(x, (0, 2, 3, 1)).astype(jnp.float32)
    y = jax.lax.conv_general_dilated(
        x, params["w3"], (1, 1), "SAME",
        dimension_numbers=("NHWC", "HWIO", "NHWC"))
    eps = 1e-5
    scale = params["bn_gamma"] / jnp.sqrt(params["bn_var"] + eps)
    bias = params["bn_beta"] - params["bn_mean"] * scale
    shared = jnp.maximum(y * scale + bias, 0.0)
    off = jnp.einsum("bhwc,co->bhwo", shared, params["w_off"]) + params["b_off"]
    cf = jax.nn.sigmoid(
        jnp.einsum("bhwc,co->bhwo", shared, params["w_cf"]) + params["b_cf"])
    off = jnp.transpose(off, (0, 3, 1, 2)).reshape(B, A, 2, H, W)
    cf = jnp.transpose(cf, (0, 3, 1, 2)).reshape(B, A, 2, H, W)
    mag = jnp.sqrt(off[:, :, 0] ** 2 + off[:, :, 1] ** 2)
    mask = (mag < align_thres).astype(jnp.float32)
    return off, cf, mask


def init_params(key, C, num_anchors=9):
    Cin, Cmid, A2 = 2 * C, C // 2, 2 * num_anchors
    ks = jax.random.split(key, 8)
    return {
        "w3": 0.1 * jax.random.normal(ks[0], (3, 3, Cin, Cmid), jnp.float32),
        "bn_gamma": 1.0 + 0.1 * jax.random.normal(ks[1], (Cmid,), jnp.float32),
        "bn_beta": 0.1 * jax.random.normal(ks[2], (Cmid,), jnp.float32),
        "bn_mean": 0.05 * jax.random.normal(ks[3], (Cmid,), jnp.float32),
        "bn_var": jnp.abs(1.0 + 0.1 * jax.random.normal(ks[4], (Cmid,), jnp.float32)),
        "w_off": 0.2 * jax.random.normal(ks[5], (Cmid, A2), jnp.float32),
        "b_off": 0.1 * jax.random.normal(ks[6], (A2,), jnp.float32),
        "w_cf": 0.2 * jax.random.normal(ks[7], (Cmid, A2), jnp.float32),
        "b_cf": 0.05 * jnp.ones((A2,), jnp.float32),
    }


if __name__ == "__main__":
    B, C, H, W = 2, 8, 16, 16
    A = 9
    key = jax.random.PRNGKey(0)
    k1, k2, k3 = jax.random.split(key, 3)
    rgb = jax.random.normal(k1, (B, C, H, W), jnp.float32)
    tir = jax.random.normal(k2, (B, C, H, W), jnp.float32)
    params = init_params(k3, C, num_anchors=A)

    packed_params = prepare_params(params, num_anchors=A)   # one-off (init time)

    offsets, confidences, mask = anchor_box_alignment(
        rgb, tir, packed_params, num_anchors=A, align_thres=0.5)
    jax.block_until_ready((offsets, confidences, mask))

    off_r, cf_r, mask_r = reference(rgb, tir, params, num_anchors=A,
                                    align_thres=0.5)
    assert offsets.shape == (B, A, 2, H, W)
    assert confidences.shape == (B, A, 2, H, W)
    assert mask.shape == (B, A, H, W)
    # bf16 matmul operands -> loosened tolerances vs. the f32 reference.
    assert jnp.allclose(offsets, off_r, atol=5e-2, rtol=5e-2)
    assert jnp.allclose(confidences, cf_r, atol=5e-2, rtol=5e-2)
    # The mask may legitimately flip only where the offset magnitude sits
    # within the bf16 error band of the threshold.
    mag_r = jnp.sqrt(off_r[:, :, 0] ** 2 + off_r[:, :, 1] ** 2)
    near_thres = jnp.abs(mag_r - 0.5) < 5e-2
    assert jnp.all((mask == mask_r) | near_thres)
    print("KERNEL_OK")
</pallas_src>

<mosaic_0001>
module attributes {stable_mosaic.version = 11 : i64} {
  func.func @_abam_fused_kernel(%arg0: i32, %arg1: memref<2x8x256xbf16, #tpu.memory_space<any>>, %arg2: memref<2x8x256xbf16, #tpu.memory_space<any>>, %arg3: memref<2x9x4x8xbf16, #tpu.memory_space<vmem>>, %arg4: memref<4x1xf32, #tpu.memory_space<vmem>>, %arg5: memref<4x1xf32, #tpu.memory_space<vmem>>, %arg6: memref<36x4xbf16, #tpu.memory_space<vmem>>, %arg7: memref<36x1xf32, #tpu.memory_space<vmem>>, %arg8: memref<1x45x256xf32, #tpu.memory_space<vmem>>, %arg9: memref<2x8x512xbf16, #tpu.memory_space<vmem>>, %arg10: memref<2x8x512xbf16, #tpu.memory_space<vmem>>, %arg11: memref<2x2x!tpu.dma_semaphore, #tpu.memory_space<semaphore_mem>>) attributes {dimension_semantics = [#tpu.dimension_semantics<arbitrary>], iteration_bounds = array<i64: 2>, scalar_prefetch = 0 : i64, scratch_operands = 3 : i64, tpu.core_type = #tpu.core_type<tc>, window_params = [{}, {}, {pipeline_mode = #tpu.pipeline_mode<synchronous>, transform_indices = @transform_2, window_bounds = array<i64: 2, 9, 4, 8>}, {pipeline_mode = #tpu.pipeline_mode<synchronous>, transform_indices = @transform_3, window_bounds = array<i64: 4, 1>}, {pipeline_mode = #tpu.pipeline_mode<synchronous>, transform_indices = @transform_4, window_bounds = array<i64: 4, 1>}, {pipeline_mode = #tpu.pipeline_mode<synchronous>, transform_indices = @transform_5, window_bounds = array<i64: 36, 4>}, {pipeline_mode = #tpu.pipeline_mode<synchronous>, transform_indices = @transform_6, window_bounds = array<i64: 36, 1>}, {transform_indices = @transform_7, window_bounds = array<i64: 1, 45, 256>}]} {
    %c2_i32 = arith.constant 2 : i32
    %c0_i32 = arith.constant 0 : i32
    %0 = arith.cmpi eq, %c2_i32, %c0_i32 : i32
    %c1_i32 = arith.constant 1 : i32
    %1 = arith.select %0, %c1_i32, %c2_i32 : i32
    %2 = arith.remsi %arg0, %1 : i32
    %c0_i32_0 = arith.constant 0 : i32
    %3 = arith.cmpi ne, %2, %c0_i32_0 : i32
    %c0_i32_1 = arith.constant 0 : i32
    %4 = arith.cmpi slt, %2, %c0_i32_1 : i32
    %c0_i32_2 = arith.constant 0 : i32
    %5 = arith.cmpi slt, %1, %c0_i32_2 : i32
    %6 = arith.xori %4, %5 : i1
    %7 = arith.andi %6, %3 : i1
    %8 = arith.addi %2, %1 : i32
    %9 = arith.select %7, %8, %2 : i32
    %c0_i32_3 = arith.constant 0 : i32
    %10 = arith.cmpi eq, %arg0, %c0_i32_3 : i32
    %11 = arith.extui %10 : i1 to i32
    %c0_i32_4 = arith.constant 0 : i32
    %12 = arith.cmpi ne, %11, %c0_i32_4 : i32
    scf.if %12 {
      %c0_i32_191 = arith.constant 0 : i32
      %c0_i32_192 = arith.constant 0 : i32
      %c0_i32_193 = arith.constant 0 : i32
      %c0_i32_194 = arith.constant 0 : i32
      %c0_i32_195 = arith.constant 0 : i32
      %c0_i32_196 = arith.constant 0 : i32
      %238 = tpu.memref_slice %arg1[%c0_i32_191, %c0_i32_195, %c0_i32_196] : memref<2x8x256xbf16, #tpu.memory_space<any>> -> memref<1x8x256xbf16, #tpu.memory_space<any>>
      %239 = tpu.memref_squeeze %238 : memref<1x8x256xbf16, #tpu.memory_space<any>> -> memref<8x256xbf16, #tpu.memory_space<any>>
      %c0_i32_197 = arith.constant 0 : i32
      %c128_i32_198 = arith.constant 128 : i32
      %240 = tpu.memref_slice %arg9[%c0_i32_192, %c0_i32_197, %c128_i32_198] : memref<2x8x512xbf16, #tpu.memory_space<vmem>> -> memref<1x8x256xbf16, #tpu.memory_space<vmem>>
      %241 = tpu.memref_squeeze %240 : memref<1x8x256xbf16, #tpu.memory_space<vmem>> -> memref<8x256xbf16, #tpu.memory_space<vmem>>
      %242 = tpu.memref_slice %arg11[%c0_i32_193, %c0_i32_194] : memref<2x2x!tpu.dma_semaphore, #tpu.memory_space<semaphore_mem>> -> memref<1x1x!tpu.dma_semaphore, #tpu.memory_space<semaphore_mem>>
      %243 = tpu.memref_squeeze %242 : memref<1x1x!tpu.dma_semaphore, #tpu.memory_space<semaphore_mem>> -> memref<!tpu.dma_semaphore, #tpu.memory_space<semaphore_mem>>
      tpu.enqueue_dma source(%239 : memref<8x256xbf16, #tpu.memory_space<any>>) target(%241 : memref<8x256xbf16, #tpu.memory_space<vmem>>) target_semaphore(%243 : memref<!tpu.dma_semaphore, #tpu.memory_space<semaphore_mem>>)
      %c0_i32_199 = arith.constant 0 : i32
      %c0_i32_200 = arith.constant 0 : i32
      %c0_i32_201 = arith.constant 0 : i32
      %c1_i32_202 = arith.constant 1 : i32
      %c0_i32_203 = arith.constant 0 : i32
      %c0_i32_204 = arith.constant 0 : i32
      %244 = tpu.memref_slice %arg2[%c0_i32_199, %c0_i32_203, %c0_i32_204] : memref<2x8x256xbf16, #tpu.memory_space<any>> -> memref<1x8x256xbf16, #tpu.memory_space<any>>
      %245 = tpu.memref_squeeze %244 : memref<1x8x256xbf16, #tpu.memory_space<any>> -> memref<8x256xbf16, #tpu.memory_space<any>>
      %c0_i32_205 = arith.constant 0 : i32
      %c128_i32_206 = arith.constant 128 : i32
      %246 = tpu.memref_slice %arg10[%c0_i32_200, %c0_i32_205, %c128_i32_206] : memref<2x8x512xbf16, #tpu.memory_space<vmem>> -> memref<1x8x256xbf16, #tpu.memory_space<vmem>>
      %247 = tpu.memref_squeeze %246 : memref<1x8x256xbf16, #tpu.memory_space<vmem>> -> memref<8x256xbf16, #tpu.memory_space<vmem>>
      %248 = tpu.memref_slice %arg11[%c0_i32_201, %c1_i32_202] : memref<2x2x!tpu.dma_semaphore, #tpu.memory_space<semaphore_mem>> -> memref<1x1x!tpu.dma_semaphore, #tpu.memory_space<semaphore_mem>>
      %249 = tpu.memref_squeeze %248 : memref<1x1x!tpu.dma_semaphore, #tpu.memory_space<semaphore_mem>> -> memref<!tpu.dma_semaphore, #tpu.memory_space<semaphore_mem>>
      tpu.enqueue_dma source(%245 : memref<8x256xbf16, #tpu.memory_space<any>>) target(%247 : memref<8x256xbf16, #tpu.memory_space<vmem>>) target_semaphore(%249 : memref<!tpu.dma_semaphore, #tpu.memory_space<semaphore_mem>>)
      %cst_207 = arith.constant 0.000000e+00 : bf16
      %250 = vector.broadcast %cst_207 : bf16 to vector<2x8x128xbf16>
      %cst_208 = arith.constant 0.000000e+00 : bf16
      %251 = vector.broadcast %cst_208 : bf16 to vector<2x8x128xbf16>
      %c0_209 = arith.constant 0 : index
      %c0_210 = arith.constant 0 : index
      %c0_211 = arith.constant 0 : index
      %252 = vector.load %arg9[%c0_209, %c0_210, %c0_211] : memref<2x8x512xbf16, #tpu.memory_space<vmem>>, vector<2x8x128xbf16>
      tpu.vector_store %arg9[%c0_209, %c0_210, %c0_211], %250 {strides = array<i32>} : memref<2x8x512xbf16, #tpu.memory_space<vmem>>, vector<2x8x128xbf16>,
      %c0_212 = arith.constant 0 : index
      %c0_213 = arith.constant 0 : index
      %c384 = arith.constant 384 : index
      %253 = vector.load %arg9[%c0_212, %c0_213, %c384] : memref<2x8x512xbf16, #tpu.memory_space<vmem>>, vector<2x8x128xbf16>
      tpu.vector_store %arg9[%c0_212, %c0_213, %c384], %251 {strides = array<i32>} : memref<2x8x512xbf16, #tpu.memory_space<vmem>>, vector<2x8x128xbf16>,
      %c0_214 = arith.constant 0 : index
      %c0_215 = arith.constant 0 : index
      %c0_216 = arith.constant 0 : index
      %254 = vector.load %arg10[%c0_214, %c0_215, %c0_216] : memref<2x8x512xbf16, #tpu.memory_space<vmem>>, vector<2x8x128xbf16>
      tpu.vector_store %arg10[%c0_214, %c0_215, %c0_216], %250 {strides = array<i32>} : memref<2x8x512xbf16, #tpu.memory_space<vmem>>, vector<2x8x128xbf16>,
      %c0_217 = arith.constant 0 : index
      %c0_218 = arith.constant 0 : index
      %c384_219 = arith.constant 384 : index
      %255 = vector.load %arg10[%c0_217, %c0_218, %c384_219] : memref<2x8x512xbf16, #tpu.memory_space<vmem>>, vector<2x8x128xbf16>
      tpu.vector_store %arg10[%c0_217, %c0_218, %c384_219], %251 {strides = array<i32>} : memref<2x8x512xbf16, #tpu.memory_space<vmem>>, vector<2x8x128xbf16>,
    } else {
    }
    %c1_i32_5 = arith.constant 1 : i32
    %13 = arith.addi %arg0, %c1_i32_5 : i32
    %c2_i32_6 = arith.constant 2 : i32
    %14 = arith.cmpi slt, %13, %c2_i32_6 : i32
    %15 = arith.extui %14 : i1 to i32
    %c0_i32_7 = arith.constant 0 : i32
    %16 = arith.cmpi ne, %15, %c0_i32_7 : i32
    scf.if %16 {
      %c1_i32_191 = arith.constant 1 : i32
      %238 = arith.addi %arg0, %c1_i32_191 : i32
      %c1_i32_192 = arith.constant 1 : i32
      %239 = arith.addi %arg0, %c1_i32_192 : i32
      %c2_i32_193 = arith.constant 2 : i32
      %c0_i32_194 = arith.constant 0 : i32
      %240 = arith.cmpi eq, %c2_i32_193, %c0_i32_194 : i32
      %c1_i32_195 = arith.constant 1 : i32
      %241 = arith.select %240, %c1_i32_195, %c2_i32_193 : i32
      %242 = arith.remsi %239, %241 : i32
      %c0_i32_196 = arith.constant 0 : i32
      %243 = arith.cmpi ne, %242, %c0_i32_196 : i32
      %c0_i32_197 = arith.constant 0 : i32
      %244 = arith.cmpi slt, %242, %c0_i32_197 : i32
      %c0_i32_198 = arith.constant 0 : i32
      %245 = arith.cmpi slt, %241, %c0_i32_198 : i32
      %246 = arith.xori %244, %245 : i1
      %247 = arith.andi %246, %243 : i1
      %248 = arith.addi %242, %241 : i32
      %249 = arith.select %247, %248, %242 : i32
      %c0_i32_199 = arith.constant 0 : i32
      %c0_i32_200 = arith.constant 0 : i32
      %c0_i32_201 = arith.constant 0 : i32
      %250 = tpu.memref_slice %arg1[%238, %c0_i32_200, %c0_i32_201] : memref<2x8x256xbf16, #tpu.memory_space<any>> -> memref<1x8x256xbf16, #tpu.memory_space<any>>
      %251 = tpu.memref_squeeze %250 : memref<1x8x256xbf16, #tpu.memory_space<any>> -> memref<8x256xbf16, #tpu.memory_space<any>>
      %c0_i32_202 = arith.constant 0 : i32
      %c128_i32_203 = arith.constant 128 : i32
      %252 = tpu.memref_slice %arg9[%249, %c0_i32_202, %c128_i32_203] : memref<2x8x512xbf16, #tpu.memory_space<vmem>> -> memref<1x8x256xbf16, #tpu.memory_space<vmem>>
      %253 = tpu.memref_squeeze %252 : memref<1x8x256xbf16, #tpu.memory_space<vmem>> -> memref<8x256xbf16, #tpu.memory_space<vmem>>
      %254 = tpu.memref_slice %arg11[%249, %c0_i32_199] : memref<2x2x!tpu.dma_semaphore, #tpu.memory_space<semaphore_mem>> -> memref<1x1x!tpu.dma_semaphore, #tpu.memory_space<semaphore_mem>>
      %255 = tpu.memref_squeeze %254 : memref<1x1x!tpu.dma_semaphore, #tpu.memory_space<semaphore_mem>> -> memref<!tpu.dma_semaphore, #tpu.memory_space<semaphore_mem>>
      tpu.enqueue_dma source(%251 : memref<8x256xbf16, #tpu.memory_space<any>>) target(%253 : memref<8x256xbf16, #tpu.memory_space<vmem>>) target_semaphore(%255 : memref<!tpu.dma_semaphore, #tpu.memory_space<semaphore_mem>>)
      %c1_i32_204 = arith.constant 1 : i32
      %c0_i32_205 = arith.constant 0 : i32
      %c0_i32_206 = arith.constant 0 : i32
      %256 = tpu.memref_slice %arg2[%238, %c0_i32_205, %c0_i32_206] : memref<2x8x256xbf16, #tpu.memory_space<any>> -> memref<1x8x256xbf16, #tpu.memory_space<any>>
      %257 = tpu.memref_squeeze %256 : memref<1x8x256xbf16, #tpu.memory_space<any>> -> memref<8x256xbf16, #tpu.memory_space<any>>
      %c0_i32_207 = arith.constant 0 : i32
      %c128_i32_208 = arith.constant 128 : i32
      %258 = tpu.memref_slice %arg10[%249, %c0_i32_207, %c128_i32_208] : memref<2x8x512xbf16, #tpu.memory_space<vmem>> -> memref<1x8x256xbf16, #tpu.memory_space<vmem>>
      %259 = tpu.memref_squeeze %258 : memref<1x8x256xbf16, #tpu.memory_space<vmem>> -> memref<8x256xbf16, #tpu.memory_space<vmem>>
      %260 = tpu.memref_slice %arg11[%249, %c1_i32_204] : memref<2x2x!tpu.dma_semaphore, #tpu.memory_space<semaphore_mem>> -> memref<1x1x!tpu.dma_semaphore, #tpu.memory_space<semaphore_mem>>
      %261 = tpu.memref_squeeze %260 : memref<1x1x!tpu.dma_semaphore, #tpu.memory_space<semaphore_mem>> -> memref<!tpu.dma_semaphore, #tpu.memory_space<semaphore_mem>>
      tpu.enqueue_dma source(%257 : memref<8x256xbf16, #tpu.memory_space<any>>) target(%259 : memref<8x256xbf16, #tpu.memory_space<vmem>>) target_semaphore(%261 : memref<!tpu.dma_semaphore, #tpu.memory_space<semaphore_mem>>)
    } else {
    }
    %17 = tpu.iota {dimensions = array<i32: 1>} : vector<1x256xi32>
    %c16_i32 = arith.constant 16 : i32
    %c0_i32_8 = arith.constant 0 : i32
    %18 = arith.cmpi eq, %c16_i32, %c0_i32_8 : i32
    %c1_i32_9 = arith.constant 1 : i32
    %19 = arith.select %18, %c1_i32_9, %c16_i32 : i32
    %20 = vector.broadcast %19 : i32 to vector<1x256xi32>
    %21 = arith.remsi %17, %20 : vector<1x256xi32>
    %c0_i32_10 = arith.constant 0 : i32
    %22 = vector.broadcast %c0_i32_10 : i32 to vector<1x256xi32>
    %23 = arith.cmpi ne, %21, %22 : vector<1x256xi32>
    %c0_i32_11 = arith.constant 0 : i32
    %24 = vector.broadcast %c0_i32_11 : i32 to vector<1x256xi32>
    %25 = arith.cmpi slt, %21, %24 : vector<1x256xi32>
    %c0_i32_12 = arith.constant 0 : i32
    %26 = arith.cmpi slt, %19, %c0_i32_12 : i32
    %27 = vector.broadcast %26 : i1 to vector<1x256xi1>
    %28 = vector.broadcast %27 : vector<1x256xi1> to vector<1x256xi1>
    %29 = arith.xori %25, %28 : vector<1x256xi1>
    %30 = arith.andi %29, %23 : vector<1x256xi1>
    %31 = vector.broadcast %19 : i32 to vector<1x256xi32>
    %32 = arith.addi %21, %31 : vector<1x256xi32>
    %33 = arith.select %30, %32, %21 : vector<1x256xi1>, vector<1x256xi32>
    %c0_i32_13 = arith.constant 0 : i32
    %34 = vector.broadcast %c0_i32_13 : i32 to vector<1x256xi32>
    %35 = arith.cmpi ne, %33, %34 : vector<1x256xi32>
    %c15_i32 = arith.constant 15 : i32
    %36 = vector.broadcast %c15_i32 : i32 to vector<1x256xi32>
    %37 = arith.cmpi ne, %33, %36 : vector<1x256xi32>
    %c0_i32_14 = arith.constant 0 : i32
    %c0_i32_15 = arith.constant 0 : i32
    %c0_i32_16 = arith.constant 0 : i32
    %38 = tpu.memref_slice %arg1[%arg0, %c0_i32_15, %c0_i32_16] : memref<2x8x256xbf16, #tpu.memory_space<any>> -> memref<1x8x256xbf16, #tpu.memory_space<any>>
    %39 = tpu.memref_squeeze %38 : memref<1x8x256xbf16, #tpu.memory_space<any>> -> memref<8x256xbf16, #tpu.memory_space<any>>
    %c0_i32_17 = arith.constant 0 : i32
    %c128_i32 = arith.constant 128 : i32
    %40 = tpu.memref_slice %arg9[%9, %c0_i32_17, %c128_i32] : memref<2x8x512xbf16, #tpu.memory_space<vmem>> -> memref<1x8x256xbf16, #tpu.memory_space<vmem>>
    %41 = tpu.memref_squeeze %40 : memref<1x8x256xbf16, #tpu.memory_space<vmem>> -> memref<8x256xbf16, #tpu.memory_space<vmem>>
    %42 = tpu.memref_slice %arg11[%9, %c0_i32_14] : memref<2x2x!tpu.dma_semaphore, #tpu.memory_space<semaphore_mem>> -> memref<1x1x!tpu.dma_semaphore, #tpu.memory_space<semaphore_mem>>
    %43 = tpu.memref_squeeze %42 : memref<1x1x!tpu.dma_semaphore, #tpu.memory_space<semaphore_mem>> -> memref<!tpu.dma_semaphore, #tpu.memory_space<semaphore_mem>>
    tpu.wait_dma2 semaphore(%43 : memref<!tpu.dma_semaphore, #tpu.memory_space<semaphore_mem>>) src(%39 : memref<8x256xbf16, #tpu.memory_space<any>>) dst(%41 : memref<8x256xbf16, #tpu.memory_space<vmem>>)
    %c1_i32_18 = arith.constant 1 : i32
    %c0_i32_19 = arith.constant 0 : i32
    %c0_i32_20 = arith.constant 0 : i32
    %44 = tpu.memref_slice %arg2[%arg0, %c0_i32_19, %c0_i32_20] : memref<2x8x256xbf16, #tpu.memory_space<any>> -> memref<1x8x256xbf16, #tpu.memory_space<any>>
    %45 = tpu.memref_squeeze %44 : memref<1x8x256xbf16, #tpu.memory_space<any>> -> memref<8x256xbf16, #tpu.memory_space<any>>
    %c0_i32_21 = arith.constant 0 : i32
    %c128_i32_22 = arith.constant 128 : i32
    %46 = tpu.memref_slice %arg10[%9, %c0_i32_21, %c128_i32_22] : memref<2x8x512xbf16, #tpu.memory_space<vmem>> -> memref<1x8x256xbf16, #tpu.memory_space<vmem>>
    %47 = tpu.memref_squeeze %46 : memref<1x8x256xbf16, #tpu.memory_space<vmem>> -> memref<8x256xbf16, #tpu.memory_space<vmem>>
    %48 = tpu.memref_slice %arg11[%9, %c1_i32_18] : memref<2x2x!tpu.dma_semaphore, #tpu.memory_space<semaphore_mem>> -> memref<1x1x!tpu.dma_semaphore, #tpu.memory_space<semaphore_mem>>
    %49 = tpu.memref_squeeze %48 : memref<1x1x!tpu.dma_semaphore, #tpu.memory_space<semaphore_mem>> -> memref<!tpu.dma_semaphore, #tpu.memory_space<semaphore_mem>>
    tpu.wait_dma2 semaphore(%49 : memref<!tpu.dma_semaphore, #tpu.memory_space<semaphore_mem>>) src(%45 : memref<8x256xbf16, #tpu.memory_space<any>>) dst(%47 : memref<8x256xbf16, #tpu.memory_space<vmem>>)
    %c0 = arith.constant 0 : index
    %c0_23 = arith.constant 0 : index
    %c0_24 = arith.constant 0 : index
    %c0_25 = arith.constant 0 : index
    %50 = vector.load %arg3[%c0, %c0_23, %c0_24, %c0_25] : memref<2x9x4x8xbf16, #tpu.memory_space<vmem>>, vector<1x1x4x8xbf16>
    %51 = vector.shape_cast %50 : vector<1x1x4x8xbf16> to vector<4x8xbf16>
    %c0_i32_26 = arith.constant 0 : i32
    %c0_i32_27 = arith.constant 0 : i32
    %52 = tpu.memref_slice %arg9[%9, %c0_i32_26, %c0_i32_27] : memref<2x8x512xbf16, #tpu.memory_space<vmem>> -> memref<1x8x512xbf16, #tpu.memory_space<vmem>>
    %53 = tpu.memref_squeeze %52 : memref<1x8x512xbf16, #tpu.memory_space<vmem>> -> memref<8x512xbf16, #tpu.memory_space<vmem>>
    %c0_28 = arith.constant 0 : index
    %c111 = arith.constant 111 : index
    %54 = vector.load %53[%c0_28, %c111] : memref<8x512xbf16, #tpu.memory_space<vmem>>, vector<8x256xbf16>
    %cst = arith.constant dense<0.000000e+00> : vector<4x256xf32>
    %55 = tpu.matmul %51, %54, %cst {dimension_numbers = #tpu.dot_dimension_numbers<[1], [0], [0], [1], [0, 0, 1, 1], [], []>} : vector<4x8xbf16>, vector<8x256xbf16>, vector<4x256xf32> -> vector<4x256xf32>
    %c1 = arith.constant 1 : index
    %c0_29 = arith.constant 0 : index
    %c0_30 = arith.constant 0 : index
    %c0_31 = arith.constant 0 : index
    %56 = vector.load %arg3[%c1, %c0_29, %c0_30, %c0_31] : memref<2x9x4x8xbf16, #tpu.memory_space<vmem>>, vector<1x1x4x8xbf16>
    %57 = vector.shape_cast %56 : vector<1x1x4x8xbf16> to vector<4x8xbf16>
    %c0_i32_32 = arith.constant 0 : i32
    %c0_i32_33 = arith.constant 0 : i32
    %58 = tpu.memref_slice %arg10[%9, %c0_i32_32, %c0_i32_33] : memref<2x8x512xbf16, #tpu.memory_space<vmem>> -> memref<1x8x512xbf16, #tpu.memory_space<vmem>>
    %59 = tpu.memref_squeeze %58 : memref<1x8x512xbf16, #tpu.memory_space<vmem>> -> memref<8x512xbf16, #tpu.memory_space<vmem>>
    %c0_34 = arith.constant 0 : index
    %c111_35 = arith.constant 111 : index
    %60 = vector.load %59[%c0_34, %c111_35] : memref<8x512xbf16, #tpu.memory_space<vmem>>, vector<8x256xbf16>
    %cst_36 = arith.constant dense<0.000000e+00> : vector<4x256xf32>
    %61 = tpu.matmul %57, %60, %cst_36 {dimension_numbers = #tpu.dot_dimension_numbers<[1], [0], [0], [1], [0, 0, 1, 1], [], []>} : vector<4x8xbf16>, vector<8x256xbf16>, vector<4x256xf32> -> vector<4x256xf32>
    %62 = arith.addf %55, %61 : vector<4x256xf32>
    %cst_37 = arith.constant 0.000000e+00 : f32
    %63 = vector.shape_cast %35 : vector<1x256xi1> to vector<1x256xi1>
    %64 = vector.broadcast %63 : vector<1x256xi1> to vector<4x256xi1>
    %65 = vector.broadcast %cst_37 : f32 to vector<4x256xf32>
    %66 = arith.select %64, %62, %65 : vector<4x256xi1>, vector<4x256xf32>
    %c0_38 = arith.constant 0 : index
    %c1_39 = arith.constant 1 : index
    %c0_40 = arith.constant 0 : index
    %c0_41 = arith.constant 0 : index
    %67 = vector.load %arg3[%c0_38, %c1_39, %c0_40, %c0_41] : memref<2x9x4x8xbf16, #tpu.memory_space<vmem>>, vector<1x1x4x8xbf16>
    %68 = vector.shape_cast %67 : vector<1x1x4x8xbf16> to vector<4x8xbf16>
    %c0_i32_42 = arith.constant 0 : i32
    %c0_i32_43 = arith.constant 0 : i32
    %69 = tpu.memref_slice %arg9[%9, %c0_i32_42, %c0_i32_43] : memref<2x8x512xbf16, #tpu.memory_space<vmem>> -> memref<1x8x512xbf16, #tpu.memory_space<vmem>>
    %70 = tpu.memref_squeeze %69 : memref<1x8x512xbf16, #tpu.memory_space<vmem>> -> memref<8x512xbf16, #tpu.memory_space<vmem>>
    %c0_44 = arith.constant 0 : index
    %c112 = arith.constant 112 : index
    %71 = vector.load %70[%c0_44, %c112] : memref<8x512xbf16, #tpu.memory_space<vmem>>, vector<8x256xbf16>
    %cst_45 = arith.constant dense<0.000000e+00> : vector<4x256xf32>
    %72 = tpu.matmul %68, %71, %cst_45 {dimension_numbers = #tpu.dot_dimension_numbers<[1], [0], [0], [1], [0, 0, 1, 1], [], []>} : vector<4x8xbf16>, vector<8x256xbf16>, vector<4x256xf32> -> vector<4x256xf32>
    %c1_46 = arith.constant 1 : index
    %c1_47 = arith.constant 1 : index
    %c0_48 = arith.constant 0 : index
    %c0_49 = arith.constant 0 : index
    %73 = vector.load %arg3[%c1_46, %c1_47, %c0_48, %c0_49] : memref<2x9x4x8xbf16, #tpu.memory_space<vmem>>, vector<1x1x4x8xbf16>
    %74 = vector.shape_cast %73 : vector<1x1x4x8xbf16> to vector<4x8xbf16>
    %c0_i32_50 = arith.constant 0 : i32
    %c0_i32_51 = arith.constant 0 : i32
    %75 = tpu.memref_slice %arg10[%9, %c0_i32_50, %c0_i32_51] : memref<2x8x512xbf16, #tpu.memory_space<vmem>> -> memref<1x8x512xbf16, #tpu.memory_space<vmem>>
    %76 = tpu.memref_squeeze %75 : memref<1x8x512xbf16, #tpu.memory_space<vmem>> -> memref<8x512xbf16, #tpu.memory_space<vmem>>
    %c0_52 = arith.constant 0 : index
    %c112_53 = arith.constant 112 : index
    %77 = vector.load %76[%c0_52, %c112_53] : memref<8x512xbf16, #tpu.memory_space<vmem>>, vector<8x256xbf16>
    %cst_54 = arith.constant dense<0.000000e+00> : vector<4x256xf32>
    %78 = tpu.matmul %74, %77, %cst_54 {dimension_numbers = #tpu.dot_dimension_numbers<[1], [0], [0], [1], [0, 0, 1, 1], [], []>} : vector<4x8xbf16>, vector<8x256xbf16>, vector<4x256xf32> -> vector<4x256xf32>
    %79 = arith.addf %72, %78 : vector<4x256xf32>
    %80 = arith.addf %66, %79 : vector<4x256xf32>
    %c0_55 = arith.constant 0 : index
    %c2 = arith.constant 2 : index
    %c0_56 = arith.constant 0 : index
    %c0_57 = arith.constant 0 : index
    %81 = vector.load %arg3[%c0_55, %c2, %c0_56, %c0_57] : memref<2x9x4x8xbf16, #tpu.memory_space<vmem>>, vector<1x1x4x8xbf16>
    %82 = vector.shape_cast %81 : vector<1x1x4x8xbf16> to vector<4x8xbf16>
    %c0_i32_58 = arith.constant 0 : i32
    %c0_i32_59 = arith.constant 0 : i32
    %83 = tpu.memref_slice %arg9[%9, %c0_i32_58, %c0_i32_59] : memref<2x8x512xbf16, #tpu.memory_space<vmem>> -> memref<1x8x512xbf16, #tpu.memory_space<vmem>>
    %84 = tpu.memref_squeeze %83 : memref<1x8x512xbf16, #tpu.memory_space<vmem>> -> memref<8x512xbf16, #tpu.memory_space<vmem>>
    %c0_60 = arith.constant 0 : index
    %c113 = arith.constant 113 : index
    %85 = vector.load %84[%c0_60, %c113] : memref<8x512xbf16, #tpu.memory_space<vmem>>, vector<8x256xbf16>
    %cst_61 = arith.constant dense<0.000000e+00> : vector<4x256xf32>
    %86 = tpu.matmul %82, %85, %cst_61 {dimension_numbers = #tpu.dot_dimension_numbers<[1], [0], [0], [1], [0, 0, 1, 1], [], []>} : vector<4x8xbf16>, vector<8x256xbf16>, vector<4x256xf32> -> vector<4x256xf32>
    %c1_62 = arith.constant 1 : index
    %c2_63 = arith.constant 2 : index
    %c0_64 = arith.constant 0 : index
    %c0_65 = arith.constant 0 : index
    %87 = vector.load %arg3[%c1_62, %c2_63, %c0_64, %c0_65] : memref<2x9x4x8xbf16, #tpu.memory_space<vmem>>, vector<1x1x4x8xbf16>
    %88 = vector.shape_cast %87 : vector<1x1x4x8xbf16> to vector<4x8xbf16>
    %c0_i32_66 = arith.constant 0 : i32
    %c0_i32_67 = arith.constant 0 : i32
    %89 = tpu.memref_slice %arg10[%9, %c0_i32_66, %c0_i32_67] : memref<2x8x512xbf16, #tpu.memory_space<vmem>> -> memref<1x8x512xbf16, #tpu.memory_space<vmem>>
    %90 = tpu.memref_squeeze %89 : memref<1x8x512xbf16, #tpu.memory_space<vmem>> -> memref<8x512xbf16, #tpu.memory_space<vmem>>
    %c0_68 = arith.constant 0 : index
    %c113_69 = arith.constant 113 : index
    %91 = vector.load %90[%c0_68, %c113_69] : memref<8x512xbf16, #tpu.memory_space<vmem>>, vector<8x256xbf16>
    %cst_70 = arith.constant dense<0.000000e+00> : vector<4x256xf32>
    %92 = tpu.matmul %88, %91, %cst_70 {dimension_numbers = #tpu.dot_dimension_numbers<[1], [0], [0], [1], [0, 0, 1, 1], [], []>} : vector<4x8xbf16>, vector<8x256xbf16>, vector<4x256xf32> -> vector<4x256xf32>
    %93 = arith.addf %86, %92 : vector<4x256xf32>
    %cst_71 = arith.constant 0.000000e+00 : f32
    %94 = vector.shape_cast %37 : vector<1x256xi1> to vector<1x256xi1>
    %95 = vector.broadcast %94 : vector<1x256xi1> to vector<4x256xi1>
    %96 = vector.broadcast %cst_71 : f32 to vector<4x256xf32>
    %97 = arith.select %95, %93, %96 : vector<4x256xi1>, vector<4x256xf32>
    %98 = arith.addf %80, %97 : vector<4x256xf32>
    %c0_72 = arith.constant 0 : index
    %c3 = arith.constant 3 : index
    %c0_73 = arith.constant 0 : index
    %c0_74 = arith.constant 0 : index
    %99 = vector.load %arg3[%c0_72, %c3, %c0_73, %c0_74] : memref<2x9x4x8xbf16, #tpu.memory_space<vmem>>, vector<1x1x4x8xbf16>
    %100 = vector.shape_cast %99 : vector<1x1x4x8xbf16> to vector<4x8xbf16>
    %c0_i32_75 = arith.constant 0 : i32
    %c0_i32_76 = arith.constant 0 : i32
    %101 = tpu.memref_slice %arg9[%9, %c0_i32_75, %c0_i32_76] : memref<2x8x512xbf16, #tpu.memory_space<vmem>> -> memref<1x8x512xbf16, #tpu.memory_space<vmem>>
    %102 = tpu.memref_squeeze %101 : memref<1x8x512xbf16, #tpu.memory_space<vmem>> -> memref<8x512xbf16, #tpu.memory_space<vmem>>
    %c0_77 = arith.constant 0 : index
    %c127 = arith.constant 127 : index
    %103 = vector.load %102[%c0_77, %c127] : memref<8x512xbf16, #tpu.memory_space<vmem>>, vector<8x256xbf16>
    %cst_78 = arith.constant dense<0.000000e+00> : vector<4x256xf32>
    %104 = tpu.matmul %100, %103, %cst_78 {dimension_numbers = #tpu.dot_dimension_numbers<[1], [0], [0], [1], [0, 0, 1, 1], [], []>} : vector<4x8xbf16>, vector<8x256xbf16>, vector<4x256xf32> -> vector<4x256xf32>
    %c1_79 = arith.constant 1 : index
    %c3_80 = arith.constant 3 : index
    %c0_81 = arith.constant 0 : index
    %c0_82 = arith.constant 0 : index
    %105 = vector.load %arg3[%c1_79, %c3_80, %c0_81, %c0_82] : memref<2x9x4x8xbf16, #tpu.memory_space<vmem>>, vector<1x1x4x8xbf16>
    %106 = vector.shape_cast %105 : vector<1x1x4x8xbf16> to vector<4x8xbf16>
    %c0_i32_83 = arith.constant 0 : i32
    %c0_i32_84 = arith.constant 0 : i32
    %107 = tpu.memref_slice %arg10[%9, %c0_i32_83, %c0_i32_84] : memref<2x8x512xbf16, #tpu.memory_space<vmem>> -> memref<1x8x512xbf16, #tpu.memory_space<vmem>>
    %108 = tpu.memref_squeeze %107 : memref<1x8x512xbf16, #tpu.memory_space<vmem>> -> memref<8x512xbf16, #tpu.memory_space<vmem>>
    %c0_85 = arith.constant 0 : index
    %c127_86 = arith.constant 127 : index
    %109 = vector.load %108[%c0_85, %c127_86] : memref<8x512xbf16, #tpu.memory_space<vmem>>, vector<8x256xbf16>
    %cst_87 = arith.constant dense<0.000000e+00> : vector<4x256xf32>
    %110 = tpu.matmul %106, %109, %cst_87 {dimension_numbers = #tpu.dot_dimension_numbers<[1], [0], [0], [1], [0, 0, 1, 1], [], []>} : vector<4x8xbf16>, vector<8x256xbf16>, vector<4x256xf32> -> vector<4x256xf32>
    %111 = arith.addf %104, %110 : vector<4x256xf32>
    %cst_88 = arith.constant 0.000000e+00 : f32
    %112 = vector.shape_cast %35 : vector<1x256xi1> to vector<1x256xi1>
    %113 = vector.broadcast %112 : vector<1x256xi1> to vector<4x256xi1>
    %114 = vector.broadcast %cst_88 : f32 to vector<4x256xf32>
    %115 = arith.select %113, %111, %114 : vector<4x256xi1>, vector<4x256xf32>
    %116 = arith.addf %98, %115 : vector<4x256xf32>
    %c0_89 = arith.constant 0 : index
    %c4 = arith.constant 4 : index
    %c0_90 = arith.constant 0 : index
    %c0_91 = arith.constant 0 : index
    %117 = vector.load %arg3[%c0_89, %c4, %c0_90, %c0_91] : memref<2x9x4x8xbf16, #tpu.memory_space<vmem>>, vector<1x1x4x8xbf16>
    %118 = vector.shape_cast %117 : vector<1x1x4x8xbf16> to vector<4x8xbf16>
    %c0_i32_92 = arith.constant 0 : i32
    %c0_i32_93 = arith.constant 0 : i32
    %119 = tpu.memref_slice %arg9[%9, %c0_i32_92, %c0_i32_93] : memref<2x8x512xbf16, #tpu.memory_space<vmem>> -> memref<1x8x512xbf16, #tpu.memory_space<vmem>>
    %120 = tpu.memref_squeeze %119 : memref<1x8x512xbf16, #tpu.memory_space<vmem>> -> memref<8x512xbf16, #tpu.memory_space<vmem>>
    %c0_94 = arith.constant 0 : index
    %c128 = arith.constant 128 : index
    %121 = vector.load %120[%c0_94, %c128] : memref<8x512xbf16, #tpu.memory_space<vmem>>, vector<8x256xbf16>
    %cst_95 = arith.constant dense<0.000000e+00> : vector<4x256xf32>
    %122 = tpu.matmul %118, %121, %cst_95 {dimension_numbers = #tpu.dot_dimension_numbers<[1], [0], [0], [1], [0, 0, 1, 1], [], []>} : vector<4x8xbf16>, vector<8x256xbf16>, vector<4x256xf32> -> vector<4x256xf32>
    %c1_96 = arith.constant 1 : index
    %c4_97 = arith.constant 4 : index
    %c0_98 = arith.constant 0 : index
    %c0_99 = arith.constant 0 : index
    %123 = vector.load %arg3[%c1_96, %c4_97, %c0_98, %c0_99] : memref<2x9x4x8xbf16, #tpu.memory_space<vmem>>, vector<1x1x4x8xbf16>
    %124 = vector.shape_cast %123 : vector<1x1x4x8xbf16> to vector<4x8xbf16>
    %c0_i32_100 = arith.constant 0 : i32
    %c0_i32_101 = arith.constant 0 : i32
    %125 = tpu.memref_slice %arg10[%9, %c0_i32_100, %c0_i32_101] : memref<2x8x512xbf16, #tpu.memory_space<vmem>> -> memref<1x8x512xbf16, #tpu.memory_space<vmem>>
    %126 = tpu.memref_squeeze %125 : memref<1x8x512xbf16, #tpu.memory_space<vmem>> -> memref<8x512xbf16, #tpu.memory_space<vmem>>
    %c0_102 = arith.constant 0 : index
    %c128_103 = arith.constant 128 : index
    %127 = vector.load %126[%c0_102, %c128_103] : memref<8x512xbf16, #tpu.memory_space<vmem>>, vector<8x256xbf16>
    %cst_104 = arith.constant dense<0.000000e+00> : vector<4x256xf32>
    %128 = tpu.matmul %124, %127, %cst_104 {dimension_numbers = #tpu.dot_dimension_numbers<[1], [0], [0], [1], [0, 0, 1, 1], [], []>} : vector<4x8xbf16>, vector<8x256xbf16>, vector<4x256xf32> -> vector<4x256xf32>
    %129 = arith.addf %122, %128 : vector<4x256xf32>
    %130 = arith.addf %116, %129 : vector<4x256xf32>
    %c0_105 = arith.constant 0 : index
    %c5 = arith.constant 5 : index
    %c0_106 = arith.constant 0 : index
    %c0_107 = arith.constant 0 : index
    %131 = vector.load %arg3[%c0_105, %c5, %c0_106, %c0_107] : memref<2x9x4x8xbf16, #tpu.memory_space<vmem>>, vector<1x1x4x8xbf16>
    %132 = vector.shape_cast %131 : vector<1x1x4x8xbf16> to vector<4x8xbf16>
    %c0_i32_108 = arith.constant 0 : i32
    %c0_i32_109 = arith.constant 0 : i32
    %133 = tpu.memref_slice %arg9[%9, %c0_i32_108, %c0_i32_109] : memref<2x8x512xbf16, #tpu.memory_space<vmem>> -> memref<1x8x512xbf16, #tpu.memory_space<vmem>>
    %134 = tpu.memref_squeeze %133 : memref<1x8x512xbf16, #tpu.memory_space<vmem>> -> memref<8x512xbf16, #tpu.memory_space<vmem>>
    %c0_110 = arith.constant 0 : index
    %c129 = arith.constant 129 : index
    %135 = vector.load %134[%c0_110, %c129] : memref<8x512xbf16, #tpu.memory_space<vmem>>, vector<8x256xbf16>
    %cst_111 = arith.constant dense<0.000000e+00> : vector<4x256xf32>
    %136 = tpu.matmul %132, %135, %cst_111 {dimension_numbers = #tpu.dot_dimension_numbers<[1], [0], [0], [1], [0, 0, 1, 1], [], []>} : vector<4x8xbf16>, vector<8x256xbf16>, vector<4x256xf32> -> vector<4x256xf32>
    %c1_112 = arith.constant 1 : index
    %c5_113 = arith.constant 5 : index
    %c0_114 = arith.constant 0 : index
    %c0_115 = arith.constant 0 : index
    %137 = vector.load %arg3[%c1_112, %c5_113, %c0_114, %c0_115] : memref<2x9x4x8xbf16, #tpu.memory_space<vmem>>, vector<1x1x4x8xbf16>
    %138 = vector.shape_cast %137 : vector<1x1x4x8xbf16> to vector<4x8xbf16>
    %c0_i32_116 = arith.constant 0 : i32
    %c0_i32_117 = arith.constant 0 : i32
    %139 = tpu.memref_slice %arg10[%9, %c0_i32_116, %c0_i32_117] : memref<2x8x512xbf16, #tpu.memory_space<vmem>> -> memref<1x8x512xbf16, #tpu.memory_space<vmem>>
    %140 = tpu.memref_squeeze %139 : memref<1x8x512xbf16, #tpu.memory_space<vmem>> -> memref<8x512xbf16, #tpu.memory_space<vmem>>
    %c0_118 = arith.constant 0 : index
    %c129_119 = arith.constant 129 : index
    %141 = vector.load %140[%c0_118, %c129_119] : memref<8x512xbf16, #tpu.memory_space<vmem>>, vector<8x256xbf16>
    %cst_120 = arith.constant dense<0.000000e+00> : vector<4x256xf32>
    %142 = tpu.matmul %138, %141, %cst_120 {dimension_numbers = #tpu.dot_dimension_numbers<[1], [0], [0], [1], [0, 0, 1, 1], [], []>} : vector<4x8xbf16>, vector<8x256xbf16>, vector<4x256xf32> -> vector<4x256xf32>
    %143 = arith.addf %136, %142 : vector<4x256xf32>
    %cst_121 = arith.constant 0.000000e+00 : f32
    %144 = vector.shape_cast %37 : vector<1x256xi1> to vector<1x256xi1>
    %145 = vector.broadcast %144 : vector<1x256xi1> to vector<4x256xi1>
    %146 = vector.broadcast %cst_121 : f32 to vector<4x256xf32>
    %147 = arith.select %145, %143, %146 : vector<4x256xi1>, vector<4x256xf32>
    %148 = arith.addf %130, %147 : vector<4x256xf32>
    %c0_122 = arith.constant 0 : index
    %c6 = arith.constant 6 : index
    %c0_123 = arith.constant 0 : index
    %c0_124 = arith.constant 0 : index
    %149 = vector.load %arg3[%c0_122, %c6, %c0_123, %c0_124] : memref<2x9x4x8xbf16, #tpu.memory_space<vmem>>, vector<1x1x4x8xbf16>
    %150 = vector.shape_cast %149 : vector<1x1x4x8xbf16> to vector<4x8xbf16>
    %c0_i32_125 = arith.constant 0 : i32
    %c0_i32_126 = arith.constant 0 : i32
    %151 = tpu.memref_slice %arg9[%9, %c0_i32_125, %c0_i32_126] : memref<2x8x512xbf16, #tpu.memory_space<vmem>> -> memref<1x8x512xbf16, #tpu.memory_space<vmem>>
    %152 = tpu.memref_squeeze %151 : memref<1x8x512xbf16, #tpu.memory_space<vmem>> -> memref<8x512xbf16, #tpu.memory_space<vmem>>
    %c0_127 = arith.constant 0 : index
    %c143 = arith.constant 143 : index
    %153 = vector.load %152[%c0_127, %c143] : memref<8x512xbf16, #tpu.memory_space<vmem>>, vector<8x256xbf16>
    %cst_128 = arith.constant dense<0.000000e+00> : vector<4x256xf32>
    %154 = tpu.matmul %150, %153, %cst_128 {dimension_numbers = #tpu.dot_dimension_numbers<[1], [0], [0], [1], [0, 0, 1, 1], [], []>} : vector<4x8xbf16>, vector<8x256xbf16>, vector<4x256xf32> -> vector<4x256xf32>
    %c1_129 = arith.constant 1 : index
    %c6_130 = arith.constant 6 : index
    %c0_131 = arith.constant 0 : index
    %c0_132 = arith.constant 0 : index
    %155 = vector.load %arg3[%c1_129, %c6_130, %c0_131, %c0_132] : memref<2x9x4x8xbf16, #tpu.memory_space<vmem>>, vector<1x1x4x8xbf16>
    %156 = vector.shape_cast %155 : vector<1x1x4x8xbf16> to vector<4x8xbf16>
    %c0_i32_133 = arith.constant 0 : i32
    %c0_i32_134 = arith.constant 0 : i32
    %157 = tpu.memref_slice %arg10[%9, %c0_i32_133, %c0_i32_134] : memref<2x8x512xbf16, #tpu.memory_space<vmem>> -> memref<1x8x512xbf16, #tpu.memory_space<vmem>>
    %158 = tpu.memref_squeeze %157 : memref<1x8x512xbf16, #tpu.memory_space<vmem>> -> memref<8x512xbf16, #tpu.memory_space<vmem>>
    %c0_135 = arith.constant 0 : index
    %c143_136 = arith.constant 143 : index
    %159 = vector.load %158[%c0_135, %c143_136] : memref<8x512xbf16, #tpu.memory_space<vmem>>, vector<8x256xbf16>
    %cst_137 = arith.constant dense<0.000000e+00> : vector<4x256xf32>
    %160 = tpu.matmul %156, %159, %cst_137 {dimension_numbers = #tpu.dot_dimension_numbers<[1], [0], [0], [1], [0, 0, 1, 1], [], []>} : vector<4x8xbf16>, vector<8x256xbf16>, vector<4x256xf32> -> vector<4x256xf32>
    %161 = arith.addf %154, %160 : vector<4x256xf32>
    %cst_138 = arith.constant 0.000000e+00 : f32
    %162 = vector.shape_cast %35 : vector<1x256xi1> to vector<1x256xi1>
    %163 = vector.broadcast %162 : vector<1x256xi1> to vector<4x256xi1>
    %164 = vector.broadcast %cst_138 : f32 to vector<4x256xf32>
    %165 = arith.select %163, %161, %164 : vector<4x256xi1>, vector<4x256xf32>
    %166 = arith.addf %148, %165 : vector<4x256xf32>
    %c0_139 = arith.constant 0 : index
    %c7 = arith.constant 7 : index
    %c0_140 = arith.constant 0 : index
    %c0_141 = arith.constant 0 : index
    %167 = vector.load %arg3[%c0_139, %c7, %c0_140, %c0_141] : memref<2x9x4x8xbf16, #tpu.memory_space<vmem>>, vector<1x1x4x8xbf16>
    %168 = vector.shape_cast %167 : vector<1x1x4x8xbf16> to vector<4x8xbf16>
    %c0_i32_142 = arith.constant 0 : i32
    %c0_i32_143 = arith.constant 0 : i32
    %169 = tpu.memref_slice %arg9[%9, %c0_i32_142, %c0_i32_143] : memref<2x8x512xbf16, #tpu.memory_space<vmem>> -> memref<1x8x512xbf16, #tpu.memory_space<vmem>>
    %170 = tpu.memref_squeeze %169 : memref<1x8x512xbf16, #tpu.memory_space<vmem>> -> memref<8x512xbf16, #tpu.memory_space<vmem>>
    %c0_144 = arith.constant 0 : index
    %c144 = arith.constant 144 : index
    %171 = vector.load %170[%c0_144, %c144] : memref<8x512xbf16, #tpu.memory_space<vmem>>, vector<8x256xbf16>
    %cst_145 = arith.constant dense<0.000000e+00> : vector<4x256xf32>
    %172 = tpu.matmul %168, %171, %cst_145 {dimension_numbers = #tpu.dot_dimension_numbers<[1], [0], [0], [1], [0, 0, 1, 1], [], []>} : vector<4x8xbf16>, vector<8x256xbf16>, vector<4x256xf32> -> vector<4x256xf32>
    %c1_146 = arith.constant 1 : index
    %c7_147 = arith.constant 7 : index
    %c0_148 = arith.constant 0 : index
    %c0_149 = arith.constant 0 : index
    %173 = vector.load %arg3[%c1_146, %c7_147, %c0_148, %c0_149] : memref<2x9x4x8xbf16, #tpu.memory_space<vmem>>, vector<1x1x4x8xbf16>
    %174 = vector.shape_cast %173 : vector<1x1x4x8xbf16> to vector<4x8xbf16>
    %c0_i32_150 = arith.constant 0 : i32
    %c0_i32_151 = arith.constant 0 : i32
    %175 = tpu.memref_slice %arg10[%9, %c0_i32_150, %c0_i32_151] : memref<2x8x512xbf16, #tpu.memory_space<vmem>> -> memref<1x8x512xbf16, #tpu.memory_space<vmem>>
    %176 = tpu.memref_squeeze %175 : memref<1x8x512xbf16, #tpu.memory_space<vmem>> -> memref<8x512xbf16, #tpu.memory_space<vmem>>
    %c0_152 = arith.constant 0 : index
    %c144_153 = arith.constant 144 : index
    %177 = vector.load %176[%c0_152, %c144_153] : memref<8x512xbf16, #tpu.memory_space<vmem>>, vector<8x256xbf16>
    %cst_154 = arith.constant dense<0.000000e+00> : vector<4x256xf32>
    %178 = tpu.matmul %174, %177, %cst_154 {dimension_numbers = #tpu.dot_dimension_numbers<[1], [0], [0], [1], [0, 0, 1, 1], [], []>} : vector<4x8xbf16>, vector<8x256xbf16>, vector<4x256xf32> -> vector<4x256xf32>
    %179 = arith.addf %172, %178 : vector<4x256xf32>
    %180 = arith.addf %166, %179 : vector<4x256xf32>
    %c0_155 = arith.constant 0 : index
    %c8 = arith.constant 8 : index
    %c0_156 = arith.constant 0 : index
    %c0_157 = arith.constant 0 : index
    %181 = vector.load %arg3[%c0_155, %c8, %c0_156, %c0_157] : memref<2x9x4x8xbf16, #tpu.memory_space<vmem>>, vector<1x1x4x8xbf16>
    %182 = vector.shape_cast %181 : vector<1x1x4x8xbf16> to vector<4x8xbf16>
    %c0_i32_158 = arith.constant 0 : i32
    %c0_i32_159 = arith.constant 0 : i32
    %183 = tpu.memref_slice %arg9[%9, %c0_i32_158, %c0_i32_159] : memref<2x8x512xbf16, #tpu.memory_space<vmem>> -> memref<1x8x512xbf16, #tpu.memory_space<vmem>>
    %184 = tpu.memref_squeeze %183 : memref<1x8x512xbf16, #tpu.memory_space<vmem>> -> memref<8x512xbf16, #tpu.memory_space<vmem>>
    %c0_160 = arith.constant 0 : index
    %c145 = arith.constant 145 : index
    %185 = vector.load %184[%c0_160, %c145] : memref<8x512xbf16, #tpu.memory_space<vmem>>, vector<8x256xbf16>
    %cst_161 = arith.constant dense<0.000000e+00> : vector<4x256xf32>
    %186 = tpu.matmul %182, %185, %cst_161 {dimension_numbers = #tpu.dot_dimension_numbers<[1], [0], [0], [1], [0, 0, 1, 1], [], []>} : vector<4x8xbf16>, vector<8x256xbf16>, vector<4x256xf32> -> vector<4x256xf32>
    %c1_162 = arith.constant 1 : index
    %c8_163 = arith.constant 8 : index
    %c0_164 = arith.constant 0 : index
    %c0_165 = arith.constant 0 : index
    %187 = vector.load %arg3[%c1_162, %c8_163, %c0_164, %c0_165] : memref<2x9x4x8xbf16, #tpu.memory_space<vmem>>, vector<1x1x4x8xbf16>
    %188 = vector.shape_cast %187 : vector<1x1x4x8xbf16> to vector<4x8xbf16>
    %c0_i32_166 = arith.constant 0 : i32
    %c0_i32_167 = arith.constant 0 : i32
    %189 = tpu.memref_slice %arg10[%9, %c0_i32_166, %c0_i32_167] : memref<2x8x512xbf16, #tpu.memory_space<vmem>> -> memref<1x8x512xbf16, #tpu.memory_space<vmem>>
    %190 = tpu.memref_squeeze %189 : memref<1x8x512xbf16, #tpu.memory_space<vmem>> -> memref<8x512xbf16, #tpu.memory_space<vmem>>
    %c0_168 = arith.constant 0 : index
    %c145_169 = arith.constant 145 : index
    %191 = vector.load %190[%c0_168, %c145_169] : memref<8x512xbf16, #tpu.memory_space<vmem>>, vector<8x256xbf16>
    %cst_170 = arith.constant dense<0.000000e+00> : vector<4x256xf32>
    %192 = tpu.matmul %188, %191, %cst_170 {dimension_numbers = #tpu.dot_dimension_numbers<[1], [0], [0], [1], [0, 0, 1, 1], [], []>} : vector<4x8xbf16>, vector<8x256xbf16>, vector<4x256xf32> -> vector<4x256xf32>
    %193 = arith.addf %186, %192 : vector<4x256xf32>
    %cst_171 = arith.constant 0.000000e+00 : f32
    %194 = vector.shape_cast %37 : vector<1x256xi1> to vector<1x256xi1>
    %195 = vector.broadcast %194 : vector<1x256xi1> to vector<4x256xi1>
    %196 = vector.broadcast %cst_171 : f32 to vector<4x256xf32>
    %197 = arith.select %195, %193, %196 : vector<4x256xi1>, vector<4x256xf32>
    %198 = arith.addf %180, %197 : vector<4x256xf32>
    %c0_172 = arith.constant 0 : index
    %c0_173 = arith.constant 0 : index
    %199 = vector.load %arg4[%c0_172, %c0_173] : memref<4x1xf32, #tpu.memory_space<vmem>>, vector<4x1xf32>
    %200 = vector.broadcast %199 : vector<4x1xf32> to vector<4x256xf32>
    %201 = arith.mulf %198, %200 : vector<4x256xf32>
    %c0_174 = arith.constant 0 : index
    %c0_175 = arith.constant 0 : index
    %202 = vector.load %arg5[%c0_174, %c0_175] : memref<4x1xf32, #tpu.memory_space<vmem>>, vector<4x1xf32>
    %203 = vector.broadcast %202 : vector<4x1xf32> to vector<4x256xf32>
    %204 = arith.addf %201, %203 : vector<4x256xf32>
    %cst_176 = arith.constant 0.000000e+00 : f32
    %205 = vector.broadcast %cst_176 : f32 to vector<4x256xf32>
    %206 = arith.maximumf %204, %205 : vector<4x256xf32>
    %c0_177 = arith.constant 0 : index
    %c0_178 = arith.constant 0 : index
    %207 = vector.load %arg6[%c0_177, %c0_178] : memref<36x4xbf16, #tpu.memory_space<vmem>>, vector<36x4xbf16>
    %208 = arith.truncf %206 : vector<4x256xf32> to vector<4x256xbf16>
    %cst_179 = arith.constant dense<0.000000e+00> : vector<36x256xf32>
    %209 = tpu.matmul %207, %208, %cst_179 {dimension_numbers = #tpu.dot_dimension_numbers<[1], [0], [0], [1], [0, 0, 1, 1], [], []>} : vector<36x4xbf16>, vector<4x256xbf16>, vector<36x256xf32> -> vector<36x256xf32>
    %c0_180 = arith.constant 0 : index
    %c0_181 = arith.constant 0 : index
    %210 = vector.load %arg7[%c0_180, %c0_181] : memref<36x1xf32, #tpu.memory_space<vmem>>, vector<36x1xf32>
    %211 = vector.broadcast %210 : vector<36x1xf32> to vector<36x256xf32>
    %212 = arith.addf %209, %211 : vector<36x256xf32>
    %213 = vector.extract_strided_slice %212 {offsets = [0, 0], sizes = [18, 256], strides = [1, 1]} : vector<36x256xf32> to vector<18x256xf32>
    %c0_182 = arith.constant 0 : index
    %c0_183 = arith.constant 0 : index
    %c0_184 = arith.constant 0 : index
    %214 = vector.load %arg8[%c0_182, %c0_183, %c0_184] : memref<1x45x256xf32, #tpu.memory_space<vmem>>, vector<1x18x256xf32>
    %215 = vector.shape_cast %214 : vector<1x18x256xf32> to vector<18x256xf32>
    %216 = vector.shape_cast %213 : vector<18x256xf32> to vector<1x18x256xf32>
    tpu.vector_store %arg8[%c0_182, %c0_183, %c0_184], %216 {strides = array<i32>} : memref<1x45x256xf32, #tpu.memory_space<vmem>>, vector<1x18x256xf32>,
    %217 = vector.extract_strided_slice %212 {offsets = [18, 0], sizes = [18, 256], strides = [1, 1]} : vector<36x256xf32> to vector<18x256xf32>
    %218 = arith.negf %217 : vector<18x256xf32>
    %219 = math.exp %218 : vector<18x256xf32>
    %cst_185 = arith.constant 1.000000e+00 : f32
    %220 = vector.broadcast %cst_185 : f32 to vector<18x256xf32>
    %221 = arith.addf %220, %219 : vector<18x256xf32>
    %222 = arith.divf %220, %221 : vector<18x256xf32>
    %c0_186 = arith.constant 0 : index
    %c18 = arith.constant 18 : index
    %c0_187 = arith.constant 0 : index
    %223 = vector.load %arg8[%c0_186, %c18, %c0_187] : memref<1x45x256xf32, #tpu.memory_space<vmem>>, vector<1x18x256xf32>
    %224 = vector.shape_cast %223 : vector<1x18x256xf32> to vector<18x256xf32>
    %225 = vector.shape_cast %222 : vector<18x256xf32> to vector<1x18x256xf32>
    tpu.vector_store %arg8[%c0_186, %c18, %c0_187], %225 {strides = array<i32>} : memref<1x45x256xf32, #tpu.memory_space<vmem>>, vector<1x18x256xf32>,
    %226 = vector.extract_strided_slice %212 {offsets = [0, 0], sizes = [9, 256], strides = [1, 1]} : vector<36x256xf32> to vector<9x256xf32>
    %227 = vector.extract_strided_slice %212 {offsets = [9, 0], sizes = [9, 256], strides = [1, 1]} : vector<36x256xf32> to vector<9x256xf32>
    %228 = arith.mulf %226, %226 : vector<9x256xf32>
    %229 = arith.mulf %227, %227 : vector<9x256xf32>
    %230 = arith.addf %228, %229 : vector<9x256xf32>
    %cst_188 = arith.constant 2.500000e-01 : f32
    %231 = vector.broadcast %cst_188 : f32 to vector<9x256xf32>
    %232 = arith.cmpf olt, %230, %231 : vector<9x256xf32>
    %233 = arith.extui %232 : vector<9x256xi1> to vector<9x256xi32>
    %234 = arith.sitofp %233 : vector<9x256xi32> to vector<9x256xf32>
    %c0_189 = arith.constant 0 : index
    %c36 = arith.constant 36 : index
    %c0_190 = arith.constant 0 : index
    %235 = vector.load %arg8[%c0_189, %c36, %c0_190] : memref<1x45x256xf32, #tpu.memory_space<vmem>>, vector<1x9x256xf32>
    %236 = vector.shape_cast %235 : vector<1x9x256xf32> to vector<9x256xf32>
    %237 = vector.shape_cast %234 : vector<9x256xf32> to vector<1x9x256xf32>
    tpu.vector_store %arg8[%c0_189, %c36, %c0_190], %237 {strides = array<i32>} : memref<1x45x256xf32, #tpu.memory_space<vmem>>, vector<1x9x256xf32>,
    return
  }
  func.func @transform_2(%arg0: i32) -> (i32, i32, i32, i32) {
    %c0_i32 = arith.constant 0 : i32
    %c0_i32_0 = arith.constant 0 : i32
    %c0_i32_1 = arith.constant 0 : i32
    %c0_i32_2 = arith.constant 0 : i32
    %c0_i32_3 = arith.constant 0 : i32
    return %c0_i32, %c0_i32_0, %c0_i32_1, %c0_i32_2 : i32, i32, i32, i32
  }
  func.func @transform_3(%arg0: i32) -> (i32, i32) {
    %c0_i32 = arith.constant 0 : i32
    %c0_i32_0 = arith.constant 0 : i32
    %c0_i32_1 = arith.constant 0 : i32
    return %c0_i32, %c0_i32_0 : i32, i32
  }
  func.func @transform_4(%arg0: i32) -> (i32, i32) {
    %c0_i32 = arith.constant 0 : i32
    %c0_i32_0 = arith.constant 0 : i32
    %c0_i32_1 = arith.constant 0 : i32
    return %c0_i32, %c0_i32_0 : i32, i32
  }
  func.func @transform_5(%arg0: i32) -> (i32, i32) {
    %c0_i32 = arith.constant 0 : i32
    %c0_i32_0 = arith.constant 0 : i32
    %c0_i32_1 = arith.constant 0 : i32
    return %c0_i32, %c0_i32_0 : i32, i32
  }
  func.func @transform_6(%arg0: i32) -> (i32, i32) {
    %c0_i32 = arith.constant 0 : i32
    %c0_i32_0 = arith.constant 0 : i32
    %c0_i32_1 = arith.constant 0 : i32
    return %c0_i32, %c0_i32_0 : i32, i32
  }
  func.func @transform_7(%arg0: i32) -> (i32, i32, i32) {
    %c0_i32 = arith.constant 0 : i32
    %c0_i32_0 = arith.constant 0 : i32
    %c0_i32_1 = arith.constant 0 : i32
    return %arg0, %c0_i32, %c0_i32_0 : i32, i32, i32
  }
}

</mosaic_0001>

<llo_original>
// kernel: tpu_custom_call.1
$region0: #{tpu_custom_call.1}
  #allocation0 [shape = 'u32[]', space=smem, size = 0x4, offset = 0x4, fixed_abs, tag = 'smem constant byte address 0x4 - core index']
  #allocation1 [shape = 'u32[144,128]{1,0:T(1,128)}', space=vmem, size = 0x12000, scoped, tag = 'internal scratch']
  #allocation2 [shape = 'bf16[2,8,512]{2,1,0:T(8,128)(2,1)}', space=vmem, size = 0x4000, scoped, tag = 'scratch operand']
  #allocation3 [shape = 'bf16[2,8,512]{2,1,0:T(8,128)(2,1)}', space=vmem, size = 0x4000, scoped, tag = 'scratch operand']
  #allocation4 [shape = 's32[4]{0}', space=sflag, size = 0x10, scoped, tag = 'scratch operand']
  #allocation5 [shape = 's32[]', space=sflag, size = 0x4, offset = 0, fixed_abs, tag = 'sflag constant byte address 0x0 - dummy sync flag']
  #allocation6 [shape = 's32[]', space=sflag, size = 0x4, offset = 0, fixed_abs, tag = 'sflag constant byte address 0x0 - dummy sync flag']
  #allocation7 [shape = 's32[]', space=sflag, size = 0x4, offset = 0, fixed_abs, tag = 'sflag constant byte address 0x0 - dummy sync flag']
  #allocation8 [shape = 's32[]', space=sflag, size = 0x4, offset = 0, fixed_abs, tag = 'sflag constant byte address 0x0 - dummy sync flag']
  %s0 = inlined_call_operand.vmem [shape: bf16[2,8,256], index: 0, kind: input, shape index: {}]
  %s1 = inlined_call_operand.vmem [shape: bf16[2,8,256], index: 1, kind: input, shape index: {}]
  %s2 = inlined_call_operand.vmem [shape: bf16[2,9,4,8], index: 2, kind: input, shape index: {}]
  %s3 = inlined_call_operand.vmem [shape: f32[4,1], index: 3, kind: input, shape index: {}]
  %s4 = inlined_call_operand.vmem [shape: f32[4,1], index: 4, kind: input, shape index: {}]
  %s5 = inlined_call_operand.vmem [shape: bf16[36,4], index: 5, kind: input, shape index: {}]
  %s6 = inlined_call_operand.vmem [shape: f32[36,1], index: 6, kind: input, shape index: {}]
  %s7 = inlined_call_operand.vmem [shape: f32[2,45,256], index: 7, kind: output, shape index: {}]
  %s8 = sld [smem:[#allocation0]]
  $region197: #{tpu_custom_call.1} parent=0
    _
  %s10 = ssub.s32 1, %s8
  %s11 = scalar_select 0, %s10, %s8
  loop: start=0, step=1, limit=4
  $region2: #{tpu_custom_call.1} parent=0 // loop_pre_header
    _
  $region3: #{tpu_custom_call.1} parent=0 // loop_header
    %s13 = sphi 0, %s17
    %p14 = scmp.ge.s32.totalorder %s13, 4
    %s21 = sphi 0, %s21
    %s23 = sphi 0, %s21
    %s24 = sphi 0, %s23
    %s38 = sphi 0, %s24
    %s42 = sphi 0, %s42
    %s44 = sphi 0, %s42
    %s45 = sphi 0, %s44
    %s59 = sphi 0, %s45
    %s63 = sphi 0, %s63
    %s65 = sphi 0, %s63
    %s66 = sphi 0, %s65
    %s80 = sphi 0, %s66
    %s84 = sphi 0, %s84
    %s86 = sphi 0, %s84
    %s87 = sphi 0, %s86
    %s101 = sphi 0, %s87
    %s105 = sphi 0, %s105
    %s107 = sphi 0, %s105
    %s108 = sphi 0, %s107
    %s122 = sphi 0, %s108
    %s128 = sphi 0, %s130
    %s131 = sphi 0, %s128
    %s132 = sphi 0, %s131
    %s148 = sphi 0, %s132
  $region4: #{tpu_custom_call.1} parent=0 // loop_header_branch
    %16 = sbr.rel (%p14) target = $region8
  $region5: #{tpu_custom_call.1} parent=0 // loop_body
    %s18 = ssub.s32 %s13, 1
    %s19 = ssub.s32 %s13, 2
    %s20 = sadd.s32 %s13, 1
    %s22 = sadd.s32 %s21, 1
    %p25 = scmp.eq.s32.totalorder %s13, 1
    %p26 = scmp.ne.s32.totalorder %s21, %s23
    %p27 = scmp.eq.s32.totalorder %s13, 0
    %p28 = por %p26, %p27
    %p29 = scmp.ne.s32.totalorder %s21, %s23
    %p30 = scmp.eq.s32.totalorder %s18, 1
    %p31 = por %p29, %p30
    %p32 = scmp.ne.s32.totalorder %s23, %s24
    %p33 = scmp.eq.s32.totalorder %s18, 0
    %p34 = por %p32, %p33
    %p35 = scmp.ne.s32.totalorder %s23, %s24
    %p36 = scmp.eq.s32.totalorder %s19, 1
    %p37 = por %p35, %p36
    %p39 = scmp.ne.s32.totalorder %s24, %s38
    %p40 = scmp.eq.s32.totalorder %s19, 0
    %p41 = por %p39, %p40
    %s43 = sadd.s32 %s42, 1
    %p46 = scmp.eq.s32.totalorder %s13, 1
    %p47 = scmp.ne.s32.totalorder %s42, %s44
    %p48 = scmp.eq.s32.totalorder %s13, 0
    %p49 = por %p47, %p48
    %p50 = scmp.ne.s32.totalorder %s42, %s44
    %p51 = scmp.eq.s32.totalorder %s18, 1
    %p52 = por %p50, %p51
    %p53 = scmp.ne.s32.totalorder %s44, %s45
    %p54 = scmp.eq.s32.totalorder %s18, 0
    %p55 = por %p53, %p54
    %p56 = scmp.ne.s32.totalorder %s44, %s45
    %p57 = scmp.eq.s32.totalorder %s19, 1
    %p58 = por %p56, %p57
    %p60 = scmp.ne.s32.totalorder %s45, %s59
    %p61 = scmp.eq.s32.totalorder %s19, 0
    %p62 = por %p60, %p61
    %s64 = sadd.s32 %s63, 1
    %p67 = scmp.eq.s32.totalorder %s13, 1
    %p68 = scmp.ne.s32.totalorder %s63, %s65
    %p69 = scmp.eq.s32.totalorder %s13, 0
    %p70 = por %p68, %p69
    %p71 = scmp.ne.s32.totalorder %s63, %s65
    %p72 = scmp.eq.s32.totalorder %s18, 1
    %p73 = por %p71, %p72
    %p74 = scmp.ne.s32.totalorder %s65, %s66
    %p75 = scmp.eq.s32.totalorder %s18, 0
    %p76 = por %p74, %p75
    %p77 = scmp.ne.s32.totalorder %s65, %s66
    %p78 = scmp.eq.s32.totalorder %s19, 1
    %p79 = por %p77, %p78
    %p81 = scmp.ne.s32.totalorder %s66, %s80
    %p82 = scmp.eq.s32.totalorder %s19, 0
    %p83 = por %p81, %p82
    %s85 = sadd.s32 %s84, 1
    %p88 = scmp.eq.s32.totalorder %s13, 1
    %p89 = scmp.ne.s32.totalorder %s84, %s86
    %p90 = scmp.eq.s32.totalorder %s13, 0
    %p91 = por %p89, %p90
    %p92 = scmp.ne.s32.totalorder %s84, %s86
    %p93 = scmp.eq.s32.totalorder %s18, 1
    %p94 = por %p92, %p93
    %p95 = scmp.ne.s32.totalorder %s86, %s87
    %p96 = scmp.eq.s32.totalorder %s18, 0
    %p97 = por %p95, %p96
    %p98 = scmp.ne.s32.totalorder %s86, %s87
    %p99 = scmp.eq.s32.totalorder %s19, 1
    %p100 = por %p98, %p99
    %p102 = scmp.ne.s32.totalorder %s87, %s101
    %p103 = scmp.eq.s32.totalorder %s19, 0
    %p104 = por %p102, %p103
    %s106 = sadd.s32 %s105, 1
    %p109 = scmp.eq.s32.totalorder %s13, 1
    %p110 = scmp.ne.s32.totalorder %s105, %s107
    %p111 = scmp.eq.s32.totalorder %s13, 0
    %p112 = por %p110, %p111
    %p113 = scmp.ne.s32.totalorder %s105, %s107
    %p114 = scmp.eq.s32.totalorder %s18, 1
    %p115 = por %p113, %p114
    %p116 = scmp.ne.s32.totalorder %s107, %s108
    %p117 = scmp.eq.s32.totalorder %s18, 0
    %p118 = por %p116, %p117
    %p119 = scmp.ne.s32.totalorder %s107, %s108
    %p120 = scmp.eq.s32.totalorder %s19, 1
    %p121 = por %p119, %p120
    %p123 = scmp.ne.s32.totalorder %s108, %s122
    %p124 = scmp.eq.s32.totalorder %s19, 0
    %p125 = por %p123, %p124
    %s126 = ssub.s32 %s13, %s20
    %p127 = scmp.eq.s32.totalorder %s126, 0
    %s129 = sadd.s32 %s128, 1
    %s130 = scalar_select %p127, %s128, %s129
    %p133 = pneg %p127
    %p134 = scmp.eq.s32.totalorder %s13, 1
    %p135 = por %p133, %p134
    %p136 = scmp.ne.s32.totalorder %s128, %s131
    %p137 = scmp.eq.s32.totalorder %s13, 0
    %p138 = por %p136, %p137
    %p139 = scmp.ne.s32.totalorder %s128, %s131
    %p140 = scmp.eq.s32.totalorder %s18, 1
    %p141 = por %p139, %p140
    %p142 = scmp.ne.s32.totalorder %s131, %s132
    %p143 = scmp.eq.s32.totalorder %s18, 0
    %p144 = por %p142, %p143
    %p145 = scmp.ne.s32.totalorder %s131, %s132
    %p146 = scmp.eq.s32.totalorder %s19, 1
    %p147 = por %p145, %p146
    %p149 = scmp.ne.s32.totalorder %s132, %s148
    %p150 = scmp.eq.s32.totalorder %s19, 0
    %p151 = por %p149, %p150
    %p152 = scmp.le.s32.totalorder 1, %s13
    %p153 = scmp.lt.s32.totalorder %s13, 3
    %p154 = pnand %p152, %p153
    %p155 = pneg %p154
    // Predicated region
    $region9: #{tpu_custom_call.1} parent=5 // pred_check
      _
    $region10: #{tpu_custom_call.1} parent=5 // pred_check_branch
      %157 = sbr.rel (%p154) target = $region12
    $region11: #{tpu_custom_call.1} parent=5 // pred_region
      %s158 = ssub.s32 %s13, 1
      // Predicated region
      $region13: #{tpu_custom_call.1} parent=11 // pred_check
        %p159 = pneg %p34
      $region14: #{tpu_custom_call.1} parent=11 // pred_check_branch
        %161 = sbr.rel (%p159) target = $region16
      $region15: #{tpu_custom_call.1} parent=11 // pred_region
        _
      $region16: #{tpu_custom_call.1} parent=11 // pred_fallthru
        _
      // Predicated region
      $region17: #{tpu_custom_call.1} parent=11 // pred_check
        %p162 = pneg %p55
      $region18: #{tpu_custom_call.1} parent=11 // pred_check_branch
        %164 = sbr.rel (%p162) target = $region20
      $region19: #{tpu_custom_call.1} parent=11 // pred_region
        _
      $region20: #{tpu_custom_call.1} parent=11 // pred_fallthru
        _
      // Predicated region
      $region21: #{tpu_custom_call.1} parent=11 // pred_check
        %p165 = pneg %p76
      $region22: #{tpu_custom_call.1} parent=11 // pred_check_branch
        %167 = sbr.rel (%p165) target = $region24
      $region23: #{tpu_custom_call.1} parent=11 // pred_region
        _
      $region24: #{tpu_custom_call.1} parent=11 // pred_fallthru
        _
      // Predicated region
      $region25: #{tpu_custom_call.1} parent=11 // pred_check
        %p168 = pneg %p97
      $region26: #{tpu_custom_call.1} parent=11 // pred_check_branch
        %170 = sbr.rel (%p168) target = $region28
      $region27: #{tpu_custom_call.1} parent=11 // pred_region
        _
      $region28: #{tpu_custom_call.1} parent=11 // pred_fallthru
        _
      // Predicated region
      $region29: #{tpu_custom_call.1} parent=11 // pred_check
        %p171 = pneg %p118
      $region30: #{tpu_custom_call.1} parent=11 // pred_check_branch
        %173 = sbr.rel (%p171) target = $region32
      $region31: #{tpu_custom_call.1} parent=11 // pred_region
        _
      $region32: #{tpu_custom_call.1} parent=11 // pred_fallthru
        _
    $region12: #{tpu_custom_call.1} parent=5 // pred_fallthru
      _
    %p174 = scmp.lt.s32.totalorder %s13, 2
    // Predicated region
    $region33: #{tpu_custom_call.1} parent=5 // pred_check
      %p175 = pneg %p174
    $region34: #{tpu_custom_call.1} parent=5 // pred_check_branch
      %177 = sbr.rel (%p175) target = $region36
    $region35: #{tpu_custom_call.1} parent=5 // pred_region
      _
    $region36: #{tpu_custom_call.1} parent=5 // pred_fallthru
      _
    %p178 = scmp.le.s32.totalorder 1, %s13
    %p179 = scmp.lt.s32.totalorder %s13, 3
    %p180 = pnand %p178, %p179
    %p181 = pneg %p180
    // Predicated region
    $region37: #{tpu_custom_call.1} parent=5 // pred_check
      _
    $region38: #{tpu_custom_call.1} parent=5 // pred_check_branch
      %183 = sbr.rel (%p180) target = $region40
    $region39: #{tpu_custom_call.1} parent=5 // pred_region
      %s184 = ssub.s32 %s13, 1
      %p185 = pneg %p34
      %p186 = pneg %p31
      %p187 = pneg %p55
      %p188 = pneg %p52
      %p189 = pneg %p76
      %p190 = pneg %p73
      %p191 = pneg %p97
      %p192 = pneg %p94
      %p193 = pneg %p118
      %p194 = pneg %p115
      %p195 = pneg %p144
      %p196 = pneg %p141
      %p197 = scmp.lt.s32.totalorder %s18, 1
      %s198 = scalar_select %p197, %s18, 1
      %s199 = smul.addr %s198, 12
      %s200 = smul.addr %s199, 8
      %s201 = scalar_lea.vmem %s7, %s200
      %p202 = scmp.lt.s32.totalorder %s18, 1
      %s203 = scalar_select %p202, %s18, 1
      %s204 = smul.addr %s203, 12
      %s205 = smul.addr %s204, 8
      %s206 = scalar_lea.vmem %s7, %s205
      %p208 = scmp.lt.s32.totalorder %s18, 0
      %s209 = ssub.s32 0, %s18
      %s210 = scalar_select %p208, %s209, %s18
      %s211 = sand.u32 %s210, 1
      %s212 = ssub.s32 0, %s211
      %s213 = scalar_select %p208, %s212, %s211
      %p214 = scmp.ne.s32.totalorder %s213, 0
      %p215 = scmp.lt.s32.totalorder %s213, 0
      %p216 = pnand %p215, %p214
      %p217 = pneg %p216
      %s218 = sadd.s32 %s213, 2
      %s219 = scalar_select %p217, %s218, %s213
      %p220 = scmp.eq.s32.totalorder %s18, 0
      // Predicated region
      $region41: #{tpu_custom_call.1} parent=39 // pred_check
        %p221 = pneg %p220
      $region42: #{tpu_custom_call.1} parent=39 // pred_check_branch
        %223 = sbr.rel (%p221) target = $region44
      $region43: #{tpu_custom_call.1} parent=39 // pred_region
        %s224 = scalar_lea.vmem [#allocation2], 4
        %p226 = scmp.lt.u32.totalorder 8, 8
        %p227 = pneg %p226
        // Predicated region
        $region45: #{tpu_custom_call.1} parent=43 // pred_check
          _
        $region46: #{tpu_custom_call.1} parent=43 // pred_check_branch
          %229 = sbr.rel (%p226) target = $region48
        $region47: #{tpu_custom_call.1} parent=43 // pred_region
          %s245 = sand.u32 8, 7
          %p246 = scmp.eq.s32.totalorder %s245, 0
          // Predicated region
          $region60: #{tpu_custom_call.1} parent=47 // pred_check
            %p247 = pneg %p246
          $region61: #{tpu_custom_call.1} parent=47 // pred_check_branch
            %249 = sbr.rel (%p247) target = $region63
          $region62: #{tpu_custom_call.1} parent=47 // pred_region
            loop: start=0, step=1, limit=1
            $region64: #{tpu_custom_call.1} parent=62 // loop_pre_header
              _
            $region65: #{tpu_custom_call.1} parent=62 // loop_header
              %s251 = sphi 0, %s255
              %p252 = scmp.ge.s32.totalorder %s251, 1
              %s256 = sphi %s0, %s0
              %s257 = sphi %s224, %s224
            $region66: #{tpu_custom_call.1} parent=62 // loop_header_branch
              %254 = sbr.rel (%p252) target = $region70
            $region67: #{tpu_custom_call.1} parent=62 // loop_body
              %v258 = vld [vmem:[%s256] sm:$0xff]
              %259 = vst [vmem:[%s257] sm:$0xff] %v258
            $region68: #{tpu_custom_call.1} parent=62 // loop_footer
              %s255 = sadd.s32 1, %s251
            $region69: #{tpu_custom_call.1} parent=62 // loop_footer_branch
              %250 = sbr.rel target = $region65
            $region70: #{tpu_custom_call.1} parent=62 // loop_exit
              _
          $region63: #{tpu_custom_call.1} parent=47 // pred_fallthru
            _
          %p260 = pneg %p246
          // Predicated region
          $region71: #{tpu_custom_call.1} parent=47 // pred_check
            _
          $region72: #{tpu_custom_call.1} parent=47 // pred_check_branch
            %262 = sbr.rel (%p246) target = $region74
          $region73: #{tpu_custom_call.1} parent=47 // pred_region
            %s263 = sand.u32 8, 7
          $region74: #{tpu_custom_call.1} parent=47 // pred_fallthru
            _
        $region48: #{tpu_custom_call.1} parent=43 // pred_fallthru
          _
        // Predicated region
        $region49: #{tpu_custom_call.1} parent=43 // pred_check
          %p230 = pneg %p226
        $region50: #{tpu_custom_call.1} parent=43 // pred_check_branch
          %232 = sbr.rel (%p230) target = $region52
        $region51: #{tpu_custom_call.1} parent=43 // pred_region
          %s233 = sshll.u32 1, 8
          %s234 = ssub.s32 %s233, 1
          loop: start=0, step=1, limit=1
          $region53: #{tpu_custom_call.1} parent=51 // loop_pre_header
            _
          $region54: #{tpu_custom_call.1} parent=51 // loop_header
            %s236 = sphi 0, %s240
            %p237 = scmp.ge.s32.totalorder %s236, 1
            %s241 = sphi %s0, %s0
            %s242 = sphi %s224, %s224
          $region55: #{tpu_custom_call.1} parent=51 // loop_header_branch
            %239 = sbr.rel (%p237) target = $region59
          $region56: #{tpu_custom_call.1} parent=51 // loop_body
            %v243 = vld [vmem:[%s241] sm:%s234]
            %244 = vst [vmem:[%s242] sm:%s234] %v243
          $region57: #{tpu_custom_call.1} parent=51 // loop_footer
            %s240 = sadd.s32 1, %s236
          $region58: #{tpu_custom_call.1} parent=51 // loop_footer_branch
            %235 = sbr.rel target = $region54
          $region59: #{tpu_custom_call.1} parent=51 // loop_exit
            _
        $region52: #{tpu_custom_call.1} parent=43 // pred_fallthru
          _
        // Predicated region
        $region75: #{tpu_custom_call.1} parent=43 // pred_check
          _
        $region76: #{tpu_custom_call.1} parent=43 // pred_check_branch
          %266 = sbr.rel (0) target = $region78
        $region77: #{tpu_custom_call.1} parent=43 // pred_region
          %267 = vsyncadd [#allocation4], 128
        $region78: #{tpu_custom_call.1} parent=43 // pred_fallthru
          _
        %s268 = scalar_lea.vmem [#allocation3], 4
        %s269 = scalar_lea.sflag [#allocation4], 1
        %p271 = scmp.lt.u32.totalorder 8, 8
        %p272 = pneg %p271
        // Predicated region
        $region79: #{tpu_custom_call.1} parent=43 // pred_check
          _
        $region80: #{tpu_custom_call.1} parent=43 // pred_check_branch
          %274 = sbr.rel (%p271) target = $region82
        $region81: #{tpu_custom_call.1} parent=43 // pred_region
          %s290 = sand.u32 8, 7
          %p291 = scmp.eq.s32.totalorder %s290, 0
          // Predicated region
          $region94: #{tpu_custom_call.1} parent=81 // pred_check
            %p292 = pneg %p291
          $region95: #{tpu_custom_call.1} parent=81 // pred_check_branch
            %294 = sbr.rel (%p292) target = $region97
          $region96: #{tpu_custom_call.1} parent=81 // pred_region
            loop: start=0, step=1, limit=1
            $region98: #{tpu_custom_call.1} parent=96 // loop_pre_header
              _
            $region99: #{tpu_custom_call.1} parent=96 // loop_header
              %s296 = sphi 0, %s300
              %p297 = scmp.ge.s32.totalorder %s296, 1
              %s301 = sphi %s1, %s1
              %s302 = sphi %s268, %s268
            $region100: #{tpu_custom_call.1} parent=96 // loop_header_branch
              %299 = sbr.rel (%p297) target = $region104
            $region101: #{tpu_custom_call.1} parent=96 // loop_body
              %v303 = vld [vmem:[%s301] sm:$0xff]
              %304 = vst [vmem:[%s302] sm:$0xff] %v303
            $region102: #{tpu_custom_call.1} parent=96 // loop_footer
              %s300 = sadd.s32 1, %s296
            $region103: #{tpu_custom_call.1} parent=96 // loop_footer_branch
              %295 = sbr.rel target = $region99
            $region104: #{tpu_custom_call.1} parent=96 // loop_exit
              _
          $region97: #{tpu_custom_call.1} parent=81 // pred_fallthru
            _
          %p305 = pneg %p291
          // Predicated region
          $region105: #{tpu_custom_call.1} parent=81 // pred_check
            _
          $region106: #{tpu_custom_call.1} parent=81 // pred_check_branch
            %307 = sbr.rel (%p291) target = $region108
          $region107: #{tpu_custom_call.1} parent=81 // pred_region
            %s308 = sand.u32 8, 7
          $region108: #{tpu_custom_call.1} parent=81 // pred_fallthru
            _
        $region82: #{tpu_custom_call.1} parent=43 // pred_fallthru
          _
        // Predicated region
        $region83: #{tpu_custom_call.1} parent=43 // pred_check
          %p275 = pneg %p271
        $region84: #{tpu_custom_call.1} parent=43 // pred_check_branch
          %277 = sbr.rel (%p275) target = $region86
        $region85: #{tpu_custom_call.1} parent=43 // pred_region
          %s278 = sshll.u32 1, 8
          %s279 = ssub.s32 %s278, 1
          loop: start=0, step=1, limit=1
          $region87: #{tpu_custom_call.1} parent=85 // loop_pre_header
            _
          $region88: #{tpu_custom_call.1} parent=85 // loop_header
            %s281 = sphi 0, %s285
            %p282 = scmp.ge.s32.totalorder %s281, 1
            %s286 = sphi %s1, %s1
            %s287 = sphi %s268, %s268
          $region89: #{tpu_custom_call.1} parent=85 // loop_header_branch
            %284 = sbr.rel (%p282) target = $region93
          $region90: #{tpu_custom_call.1} parent=85 // loop_body
            %v288 = vld [vmem:[%s286] sm:%s279]
            %289 = vst [vmem:[%s287] sm:%s279] %v288
          $region91: #{tpu_custom_call.1} parent=85 // loop_footer
            %s285 = sadd.s32 1, %s281
          $region92: #{tpu_custom_call.1} parent=85 // loop_footer_branch
            %280 = sbr.rel target = $region88
          $region93: #{tpu_custom_call.1} parent=85 // loop_exit
            _
        $region86: #{tpu_custom_call.1} parent=43 // pred_fallthru
          _
        // Predicated region
        $region109: #{tpu_custom_call.1} parent=43 // pred_check
          _
        $region110: #{tpu_custom_call.1} parent=43 // pred_check_branch
          %311 = sbr.rel (0) target = $region112
        $region111: #{tpu_custom_call.1} parent=43 // pred_region
          %312 = vsyncadd %s269, 128
        $region112: #{tpu_custom_call.1} parent=43 // pred_fallthru
          _
        %313 = vst [vmem:[#allocation2] sm:$0xf] 0
        %314 = vst [vmem:[#allocation2 + $0x10] sm:$0xf] 0
        %315 = vst [vmem:[#allocation2 + $0xc] sm:$0xf] 0
        %316 = vst [vmem:[#allocation2 + $0x1c] sm:$0xf] 0
        %317 = vst [vmem:[#allocation3] sm:$0xf] 0
        %318 = vst [vmem:[#allocation3 + $0x10] sm:$0xf] 0
        %319 = vst [vmem:[#allocation3 + $0xc] sm:$0xf] 0
        %320 = vst [vmem:[#allocation3 + $0x1c] sm:$0xf] 0
      $region44: #{tpu_custom_call.1} parent=39 // pred_fallthru
        _
      %s321 = sadd.s32 %s18, 1
      %p322 = scmp.lt.s32.totalorder %s321, 2
      // Predicated region
      $region113: #{tpu_custom_call.1} parent=39 // pred_check
        %p323 = pneg %p322
      $region114: #{tpu_custom_call.1} parent=39 // pred_check_branch
        %325 = sbr.rel (%p323) target = $region116
      $region115: #{tpu_custom_call.1} parent=39 // pred_region
        %p326 = scmp.lt.s32.totalorder %s321, 0
        %s327 = ssub.s32 0, %s321
        %s328 = scalar_select %p326, %s327, %s321
        %s329 = sand.u32 %s328, 1
        %s330 = ssub.s32 0, %s329
        %s331 = scalar_select %p326, %s330, %s329
        %p332 = scmp.ne.s32.totalorder %s331, 0
        %p333 = scmp.lt.s32.totalorder %s331, 0
        %p334 = pnand %p333, %p332
        %p335 = pneg %p334
        %s336 = sadd.s32 %s331, 2
        %s337 = scalar_select %p335, %s336, %s331
        %s338 = smul.u32 %s321, 2
        %s339 = smul.addr %s338, 4
        %s340 = scalar_lea.vmem %s0, %s339
        %s341 = smul.u32 %s337, 4
        %s342 = sadd.s32 1, %s341
        %s343 = smul.addr %s342, 4
        %s344 = scalar_lea.vmem [#allocation2], %s343
        %s345 = smul.u32 %s337, 2
        %s346 = scalar_lea.sflag [#allocation4], %s345
        %p348 = scmp.lt.u32.totalorder 8, 8
        %p349 = pneg %p348
        // Predicated region
        $region117: #{tpu_custom_call.1} parent=115 // pred_check
          _
        $region118: #{tpu_custom_call.1} parent=115 // pred_check_branch
          %351 = sbr.rel (%p348) target = $region120
        $region119: #{tpu_custom_call.1} parent=115 // pred_region
          %s367 = sand.u32 8, 7
          %p368 = scmp.eq.s32.totalorder %s367, 0
          // Predicated region
          $region132: #{tpu_custom_call.1} parent=119 // pred_check
            %p369 = pneg %p368
          $region133: #{tpu_custom_call.1} parent=119 // pred_check_branch
            %371 = sbr.rel (%p369) target = $region135
          $region134: #{tpu_custom_call.1} parent=119 // pred_region
            loop: start=0, step=1, limit=1
            $region136: #{tpu_custom_call.1} parent=134 // loop_pre_header
              _
            $region137: #{tpu_custom_call.1} parent=134 // loop_header
              %s373 = sphi 0, %s377
              %p374 = scmp.ge.s32.totalorder %s373, 1
              %s378 = sphi %s340, %s340
              %s379 = sphi %s344, %s344
            $region138: #{tpu_custom_call.1} parent=134 // loop_header_branch
              %376 = sbr.rel (%p374) target = $region142
            $region139: #{tpu_custom_call.1} parent=134 // loop_body
              %v380 = vld [vmem:[%s378] sm:$0xff]
              %381 = vst [vmem:[%s379] sm:$0xff] %v380
            $region140: #{tpu_custom_call.1} parent=134 // loop_footer
              %s377 = sadd.s32 1, %s373
            $region141: #{tpu_custom_call.1} parent=134 // loop_footer_branch
              %372 = sbr.rel target = $region137
            $region142: #{tpu_custom_call.1} parent=134 // loop_exit
              _
          $region135: #{tpu_custom_call.1} parent=119 // pred_fallthru
            _
          %p382 = pneg %p368
          // Predicated region
          $region143: #{tpu_custom_call.1} parent=119 // pred_check
            _
          $region144: #{tpu_custom_call.1} parent=119 // pred_check_branch
            %384 = sbr.rel (%p368) target = $region146
          $region145: #{tpu_custom_call.1} parent=119 // pred_region
            %s385 = sand.u32 8, 7
          $region146: #{tpu_custom_call.1} parent=119 // pred_fallthru
            _
        $region120: #{tpu_custom_call.1} parent=115 // pred_fallthru
          _
        // Predicated region
        $region121: #{tpu_custom_call.1} parent=115 // pred_check
          %p352 = pneg %p348
        $region122: #{tpu_custom_call.1} parent=115 // pred_check_branch
          %354 = sbr.rel (%p352) target = $region124
        $region123: #{tpu_custom_call.1} parent=115 // pred_region
          %s355 = sshll.u32 1, 8
          %s356 = ssub.s32 %s355, 1
          loop: start=0, step=1, limit=1
          $region125: #{tpu_custom_call.1} parent=123 // loop_pre_header
            _
          $region126: #{tpu_custom_call.1} parent=123 // loop_header
            %s358 = sphi 0, %s362
            %p359 = scmp.ge.s32.totalorder %s358, 1
            %s363 = sphi %s340, %s340
            %s364 = sphi %s344, %s344
          $region127: #{tpu_custom_call.1} parent=123 // loop_header_branch
            %361 = sbr.rel (%p359) target = $region131
          $region128: #{tpu_custom_call.1} parent=123 // loop_body
            %v365 = vld [vmem:[%s363] sm:%s356]
            %366 = vst [vmem:[%s364] sm:%s356] %v365
          $region129: #{tpu_custom_call.1} parent=123 // loop_footer
            %s362 = sadd.s32 1, %s358
          $region130: #{tpu_custom_call.1} parent=123 // loop_footer_branch
            %357 = sbr.rel target = $region126
          $region131: #{tpu_custom_call.1} parent=123 // loop_exit
            _
        $region124: #{tpu_custom_call.1} parent=115 // pred_fallthru
          _
        // Predicated region
        $region147: #{tpu_custom_call.1} parent=115 // pred_check
          _
        $region148: #{tpu_custom_call.1} parent=115 // pred_check_branch
          %388 = sbr.rel (0) target = $region150
        $region149: #{tpu_custom_call.1} parent=115 // pred_region
          %389 = vsyncadd %s346, 128
        $region150: #{tpu_custom_call.1} parent=115 // pred_fallthru
          _
        %s390 = smul.addr %s338, 4
        %s391 = scalar_lea.vmem %s1, %s390
        %s392 = smul.addr %s342, 4
        %s393 = scalar_lea.vmem [#allocation3], %s392
        %s394 = sadd.s32 1, %s345
        %s395 = scalar_lea.sflag [#allocation4], %s394
        %p397 = scmp.lt.u32.totalorder 8, 8
        %p398 = pneg %p397
        // Predicated region
        $region151: #{tpu_custom_call.1} parent=115 // pred_check
          _
        $region152: #{tpu_custom_call.1} parent=115 // pred_check_branch
          %400 = sbr.rel (%p397) target = $region154
        $region153: #{tpu_custom_call.1} parent=115 // pred_region
          %s416 = sand.u32 8, 7
          %p417 = scmp.eq.s32.totalorder %s416, 0
          // Predicated region
          $region166: #{tpu_custom_call.1} parent=153 // pred_check
            %p418 = pneg %p417
          $region167: #{tpu_custom_call.1} parent=153 // pred_check_branch
            %420 = sbr.rel (%p418) target = $region169
          $region168: #{tpu_custom_call.1} parent=153 // pred_region
            loop: start=0, step=1, limit=1
            $region170: #{tpu_custom_call.1} parent=168 // loop_pre_header
              _
            $region171: #{tpu_custom_call.1} parent=168 // loop_header
              %s422 = sphi 0, %s426
              %p423 = scmp.ge.s32.totalorder %s422, 1
              %s427 = sphi %s391, %s391
              %s428 = sphi %s393, %s393
            $region172: #{tpu_custom_call.1} parent=168 // loop_header_branch
              %425 = sbr.rel (%p423) target = $region176
            $region173: #{tpu_custom_call.1} parent=168 // loop_body
              %v429 = vld [vmem:[%s427] sm:$0xff]
              %430 = vst [vmem:[%s428] sm:$0xff] %v429
            $region174: #{tpu_custom_call.1} parent=168 // loop_footer
              %s426 = sadd.s32 1, %s422
            $region175: #{tpu_custom_call.1} parent=168 // loop_footer_branch
              %421 = sbr.rel target = $region171
            $region176: #{tpu_custom_call.1} parent=168 // loop_exit
              _
          $region169: #{tpu_custom_call.1} parent=153 // pred_fallthru
            _
          %p431 = pneg %p417
          // Predicated region
          $region177: #{tpu_custom_call.1} parent=153 // pred_check
            _
          $region178: #{tpu_custom_call.1} parent=153 // pred_check_branch
            %433 = sbr.rel (%p417) target = $region180
          $region179: #{tpu_custom_call.1} parent=153 // pred_region
            %s434 = sand.u32 8, 7
          $region180: #{tpu_custom_call.1} parent=153 // pred_fallthru
            _
        $region154: #{tpu_custom_call.1} parent=115 // pred_fallthru
          _
        // Predicated region
        $region155: #{tpu_custom_call.1} parent=115 // pred_check
          %p401 = pneg %p397
        $region156: #{tpu_custom_call.1} parent=115 // pred_check_branch
          %403 = sbr.rel (%p401) target = $region158
        $region157: #{tpu_custom_call.1} parent=115 // pred_region
          %s404 = sshll.u32 1, 8
          %s405 = ssub.s32 %s404, 1
          loop: start=0, step=1, limit=1
          $region159: #{tpu_custom_call.1} parent=157 // loop_pre_header
            _
          $region160: #{tpu_custom_call.1} parent=157 // loop_header
            %s407 = sphi 0, %s411
            %p408 = scmp.ge.s32.totalorder %s407, 1
            %s412 = sphi %s391, %s391
            %s413 = sphi %s393, %s393
          $region161: #{tpu_custom_call.1} parent=157 // loop_header_branch
            %410 = sbr.rel (%p408) target = $region165
          $region162: #{tpu_custom_call.1} parent=157 // loop_body
            %v414 = vld [vmem:[%s412] sm:%s405]
            %415 = vst [vmem:[%s413] sm:%s405] %v414
          $region163: #{tpu_custom_call.1} parent=157 // loop_footer
            %s411 = sadd.s32 1, %s407
          $region164: #{tpu_custom_call.1} parent=157 // loop_footer_branch
            %406 = sbr.rel target = $region160
          $region165: #{tpu_custom_call.1} parent=157 // loop_exit
            _
        $region158: #{tpu_custom_call.1} parent=115 // pred_fallthru
          _
        // Predicated region
        $region181: #{tpu_custom_call.1} parent=115 // pred_check
          _
        $region182: #{tpu_custom_call.1} parent=115 // pred_check_branch
          %437 = sbr.rel (0) target = $region184
        $region183: #{tpu_custom_call.1} parent=115 // pred_region
          %438 = vsyncadd %s395, 128
        $region184: #{tpu_custom_call.1} parent=115 // pred_fallthru
          _
      $region116: #{tpu_custom_call.1} parent=39 // pred_fallthru
        _
      %v439 = vlaneseq
      %v440 = vand.u32 %v439, 127
      %v441 = vadd.s32 %v440, 128
      %vm442 = vcmp.lt.s32.totalorder %v440, 0
      %v443 = vsub.s32 0, %v440
      %v444 = vsel %vm442, %v443, %v440
      %v445 = vshrl.u32 %v444, 4
      %v446 = vand.u32 %v444, 15
      %v447 = vsub.s32 0, %v446
      %v448 = vsel %vm442, %v447, %v446
      %vm449 = vcmp.lt.s32.totalorder %v441, 0
      %v450 = vsub.s32 0, %v441
      %v451 = vsel %vm449, %v450, %v441
      %v452 = vshrl.u32 %v451, 4
      %v453 = vand.u32 %v451, 15
      %v454 = vsub.s32 0, %v453
      %v455 = vsel %vm449, %v454, %v453
      %vm456 = vcmp.ne.s32.totalorder %v448, 0
      %vm457 = vcmp.ne.s32.totalorder %v455, 0
      %vm458 = vcmp.lt.s32.totalorder %v448, 0
      %vm459 = vcmp.lt.s32.totalorder %v455, 0
      %vm460 = vmand %vm458, %vm456
      %vm461 = vmand %vm459, %vm457
      %v462 = vadd.s32 %v448, 16
      %v463 = vadd.s32 %v455, 16
      %v464 = vsel %vm460, %v462, %v448
      %v465 = vsel %vm461, %v463, %v455
      %vm466 = vcmp.ne.s32.totalorder %v464, 0
      %vm467 = vcmp.ne.s32.totalorder %v465, 0
      %vm468 = vcmp.ne.s32.totalorder %v464, 15
      %vm469 = vcmp.ne.s32.totalorder %v465, 15
      %s470 = smul.u32 %s219, 2
      %s471 = scalar_lea.sflag [#allocation4], %s470
      %s472 = smul.u32 4, 1
      %s473 = smul.u32 %s472, 2
      %s474 = sshll.u32 %s473, 4
      %475 = dma.done %s471, %s474
      %s476 = sadd.s32 1, %s470
      %s477 = scalar_lea.sflag [#allocation4], %s476
      %s478 = sshll.u32 %s473, 4
      %479 = dma.done %s477, %s478
      %v480 = vld [vmem:[%s2] sm:$0x3]
      %s481 = smul.u32 %s219, 4
      %s482 = smul.addr %s481, 4
      %s483 = scalar_lea.vmem [#allocation2], %s482
      %v484 = vld [vmem:[%s483] sm:$0xff]
      %v485 = vld [vmem:[%s483 + $0x8] sm:$0xf]
      %s486 = scalar_lea.vmem %s2, 18
      %v487 = vld [vmem:[%s486] sm:$0x3]
      %s488 = smul.addr %s481, 4
      %s489 = scalar_lea.vmem [#allocation3], %s488
      %v490 = vld [vmem:[%s489] sm:$0xff]
      %v491 = vld [vmem:[%s489 + $0x8] sm:$0xf]
      %v494 = vunpack.c.l.b16 %v490
      %v495 = vunpack.c.h.b16 %v490
      %v496 = vunpack.c.l.b16 %v491
      %v497 = vpack.c.b16 %v494, %v494
      %v498 = vpack.c.b16 %v495, %v495
      %v499 = vpack.c.b16 %v496, %v496
      %500 = vrot.lane.b32.xlu0 %v497, 17
      %v501 = vpop.permute.xlu0 %500
      %502 = vrot.lane.b32.xlu0 %v498, 17
      %v503 = vpop.permute.xlu0 %502
      %504 = vrot.lane.b32.xlu0 %v499, 17
      %v505 = vpop.permute.xlu0 %504
      %vm506 = vcmask 138240
      %v507 = vsel %vm506, %v501, %v503
      %v508 = vsel %vm506, %v503, %v505
      %vm509 = vcmask 64512
      %v511 = vsel %vm509, %v487, 0
      %vm513 = vcmask 1043456
      %v515 = vsel %vm513, %v507, 0
      %v518 = vsel %vm513, %v508, 0
      %520 = vmatprep.subr.bf16.mxu0 0
      %521 = vmatpush1.bf16.msra.mxu0 0
      %522 = vmatprep.subr.bf16.mxu0 0
      %523 = vmatpush1.bf16.msra.mxu0 0
      %524 = vmatprep.subr.bf16.mxu0 0
      %525 = vmatpush1.bf16.msra.mxu0 0
      %526 = vmatprep.subr.bf16.mxu0 0
      %527 = vmatpush1.bf16.msra.mxu0 0
      %528 = vmatprep.subr.bf16.mxu0 0
      %529 = vmatpush1.bf16.msra.mxu0 0
      %530 = vmatprep.subr.bf16.mxu0 0
      %531 = vmatpush1.bf16.msra.mxu0 0
      %532 = vmatprep.subr.bf16.mxu0 0
      %533 = vmatpush1.bf16.msra.mxu0 0
      %534 = vmatprep.subr.bf16.mxu0 %v518
      %535 = vmatpush1.bf16.msra.mxu0 %v515
      %536 = vmatprep.subr.bf16.mxu0 0
      %537 = vmatpush2.bf16.msra.mxu0 0
      %538 = vmatprep.subr.bf16.mxu0 0
      %539 = vmatpush2.bf16.msra.mxu0 0
      %540 = vmatprep.subr.bf16.mxu0 0
      %541 = vmatpush2.bf16.msra.mxu0 0
      %542 = vmatprep.subr.bf16.mxu0 0
      %543 = vmatpush2.bf16.msra.mxu0 0
      %544 = vmatprep.subr.bf16.mxu0 0
      %545 = vmatpush2.bf16.msra.mxu0 0
      %546 = vmatprep.subr.bf16.mxu0 0
      %547 = vmatpush2.bf16.msra.mxu0 0
      %548 = vmatprep.subr.bf16.mxu0 0
      %549 = vmatpush2.bf16.msra.mxu0 0
      %550 = vmatprep.subr.bf16.mxu0 0
      %551 = vmatpush2.bf16.msra.mxu0 0
      %552 = vmatprep.mubr.bf16.mxu0 0
      %553 = vmatmul.mubr.bf16.gmra.mxu0 %v511
      %v554 = vpop.f32.mrf.mxu0
      %v555 = vadd.f32 0.0, %v554
      %v556 = vpop.f32.mrf.mxu0
      %v557 = vadd.f32 0.0, %v556
      %v558 = vpop.f32.mrf.mxu0
      %v559 = vpop.f32.mrf.mxu0
      %560 = vdwg.mxu0
      %v563 = vunpack.c.l.b16 %v484
      %v564 = vunpack.c.h.b16 %v484
      %v565 = vunpack.c.l.b16 %v485
      %v566 = vpack.c.b16 %v563, %v563
      %v567 = vpack.c.b16 %v564, %v564
      %v568 = vpack.c.b16 %v565, %v565
      %569 = vrot.lane.b32.xlu0 %v566, 17
      %v570 = vpop.permute.xlu0 %569
      %571 = vrot.lane.b32.xlu0 %v567, 17
      %v572 = vpop.permute.xlu0 %571
      %573 = vrot.lane.b32.xlu0 %v568, 17
      %v574 = vpop.permute.xlu0 %573
      %v575 = vsel %vm506, %v570, %v572
      %v576 = vsel %vm506, %v572, %v574
      %v578 = vsel %vm509, %v480, 0
      %v581 = vsel %vm513, %v575, 0
      %v584 = vsel %vm513, %v576, 0
      %586 = vmatprep.subr.bf16.mxu0 0
      %587 = vmatpush1.bf16.msra.mxu0 0
      %588 = vmatprep.subr.bf16.mxu0 0
      %589 = vmatpush1.bf16.msra.mxu0 0
      %590 = vmatprep.subr.bf16.mxu0 0
      %591 = vmatpush1.bf16.msra.mxu0 0
      %592 = vmatprep.subr.bf16.mxu0 0
      %593 = vmatpush1.bf16.msra.mxu0 0
      %594 = vmatprep.subr.bf16.mxu0 0
      %595 = vmatpush1.bf16.msra.mxu0 0
      %596 = vmatprep.subr.bf16.mxu0 0
      %597 = vmatpush1.bf16.msra.mxu0 0
      %598 = vmatprep.subr.bf16.mxu0 0
      %599 = vmatpush1.bf16.msra.mxu0 0
      %600 = vmatprep.subr.bf16.mxu0 %v584
      %601 = vmatpush1.bf16.msra.mxu0 %v581
      %602 = vmatprep.subr.bf16.mxu0 0
      %603 = vmatpush2.bf16.msra.mxu0 0
      %604 = vmatprep.subr.bf16.mxu0 0
      %605 = vmatpush2.bf16.msra.mxu0 0
      %606 = vmatprep.subr.bf16.mxu0 0
      %607 = vmatpush2.bf16.msra.mxu0 0
      %608 = vmatprep.subr.bf16.mxu0 0
      %609 = vmatpush2.bf16.msra.mxu0 0
      %610 = vmatprep.subr.bf16.mxu0 0
      %611 = vmatpush2.bf16.msra.mxu0 0
      %612 = vmatprep.subr.bf16.mxu0 0
      %613 = vmatpush2.bf16.msra.mxu0 0
      %614 = vmatprep.subr.bf16.mxu0 0
      %615 = vmatpush2.bf16.msra.mxu0 0
      %616 = vmatprep.subr.bf16.mxu0 0
      %617 = vmatpush2.bf16.msra.mxu0 0
      %618 = vmatprep.mubr.bf16.mxu0 0
      %619 = vmatmul.mubr.bf16.gmra.mxu0 %v578
      %v620 = vpop.f32.mrf.mxu0
      %v621 = vadd.f32 %v555, %v620
      %v622 = vpop.f32.mrf.mxu0
      %v623 = vadd.f32 %v557, %v622
      %v624 = vpop.f32.mrf.mxu0
      %v625 = vpop.f32.mrf.mxu0
      %626 = vdwg.mxu0
      %v627 = vsel %vm466, 1, 0
      %v628 = vsel %vm467, 1, 0
      %vm629 = vcmp.eq.s32.totalorder %v627, 1
      %vm630 = vcmp.eq.s32.totalorder %v628, 1
      %v631 = vsel %vm629, %v621, 0.0
      %v632 = vsel %vm630, %v623, 0.0
      %s633 = scalar_lea.vmem %s2, 2
      %v634 = vld [vmem:[%s633] sm:$0x3]
      %s635 = scalar_lea.vmem %s2, 20
      %v636 = vld [vmem:[%s635] sm:$0x3]
      %637 = vrot.lane.b32.xlu0 %v497, 16
      %v638 = vpop.permute.xlu0 %637
      %639 = vrot.lane.b32.xlu0 %v498, 16
      %v640 = vpop.permute.xlu0 %639
      %641 = vrot.lane.b32.xlu0 %v499, 16
      %v642 = vpop.permute.xlu0 %641
      %vm643 = vcmask 130048
      %v644 = vsel %vm643, %v638, %v640
      %v645 = vsel %vm643, %v640, %v642
      %v647 = vsel %vm509, %v636, 0
      %v650 = vsel %vm513, %v644, 0
      %v653 = vsel %vm513, %v645, 0
      %655 = vmatprep.subr.bf16.mxu0 0
      %656 = vmatpush1.bf16.msra.mxu0 0
      %657 = vmatprep.subr.bf16.mxu0 0
      %658 = vmatpush1.bf16.msra.mxu0 0
      %659 = vmatprep.subr.bf16.mxu0 0
      %660 = vmatpush1.bf16.msra.mxu0 0
      %661 = vmatprep.subr.bf16.mxu0 0
      %662 = vmatpush1.bf16.msra.mxu0 0
      %663 = vmatprep.subr.bf16.mxu0 0
      %664 = vmatpush1.bf16.msra.mxu0 0
      %665 = vmatprep.subr.bf16.mxu0 0
      %666 = vmatpush1.bf16.msra.mxu0 0
      %667 = vmatprep.subr.bf16.mxu0 0
      %668 = vmatpush1.bf16.msra.mxu0 0
      %669 = vmatprep.subr.bf16.mxu0 %v653
      %670 = vmatpush1.bf16.msra.mxu0 %v650
      %671 = vmatprep.subr.bf16.mxu0 0
      %672 = vmatpush2.bf16.msra.mxu0 0
      %673 = vmatprep.subr.bf16.mxu0 0
      %674 = vmatpush2.bf16.msra.mxu0 0
      %675 = vmatprep.subr.bf16.mxu0 0
      %676 = vmatpush2.bf16.msra.mxu0 0
      %677 = vmatprep.subr.bf16.mxu0 0
      %678 = vmatpush2.bf16.msra.mxu0 0
      %679 = vmatprep.subr.bf16.mxu0 0
      %680 = vmatpush2.bf16.msra.mxu0 0
      %681 = vmatprep.subr.bf16.mxu0 0
      %682 = vmatpush2.bf16.msra.mxu0 0
      %683 = vmatprep.subr.bf16.mxu0 0
      %684 = vmatpush2.bf16.msra.mxu0 0
      %685 = vmatprep.subr.bf16.mxu0 0
      %686 = vmatpush2.bf16.msra.mxu0 0
      %687 = vmatprep.mubr.bf16.mxu0 0
      %688 = vmatmul.mubr.bf16.gmra.mxu0 %v647
      %v689 = vpop.f32.mrf.mxu0
      %v690 = vadd.f32 0.0, %v689
      %v691 = vpop.f32.mrf.mxu0
      %v692 = vadd.f32 0.0, %v691
      %v693 = vpop.f32.mrf.mxu0
      %v694 = vpop.f32.mrf.mxu0
      %695 = vdwg.mxu0
      %696 = vrot.lane.b32.xlu0 %v566, 16
      %v697 = vpop.permute.xlu0 %696
      %698 = vrot.lane.b32.xlu0 %v567, 16
      %v699 = vpop.permute.xlu0 %698
      %700 = vrot.lane.b32.xlu0 %v568, 16
      %v701 = vpop.permute.xlu0 %700
      %v702 = vsel %vm643, %v697, %v699
      %v703 = vsel %vm643, %v699, %v701
      %v705 = vsel %vm509, %v634, 0
      %v708 = vsel %vm513, %v702, 0
      %v711 = vsel %vm513, %v703, 0
      %713 = vmatprep.subr.bf16.mxu0 0
      %714 = vmatpush1.bf16.msra.mxu0 0
      %715 = vmatprep.subr.bf16.mxu0 0
      %716 = vmatpush1.bf16.msra.mxu0 0
      %717 = vmatprep.subr.bf16.mxu0 0
      %718 = vmatpush1.bf16.msra.mxu0 0
      %719 = vmatprep.subr.bf16.mxu0 0
      %720 = vmatpush1.bf16.msra.mxu0 0
      %721 = vmatprep.subr.bf16.mxu0 0
      %722 = vmatpush1.bf16.msra.mxu0 0
      %723 = vmatprep.subr.bf16.mxu0 0
      %724 = vmatpush1.bf16.msra.mxu0 0
      %725 = vmatprep.subr.bf16.mxu0 0
      %726 = vmatpush1.bf16.msra.mxu0 0
      %727 = vmatprep.subr.bf16.mxu0 %v711
      %728 = vmatpush1.bf16.msra.mxu0 %v708
      %729 = vmatprep.subr.bf16.mxu0 0
      %730 = vmatpush2.bf16.msra.mxu0 0
      %731 = vmatprep.subr.bf16.mxu0 0
      %732 = vmatpush2.bf16.msra.mxu0 0
      %733 = vmatprep.subr.bf16.mxu0 0
      %734 = vmatpush2.bf16.msra.mxu0 0
      %735 = vmatprep.subr.bf16.mxu0 0
      %736 = vmatpush2.bf16.msra.mxu0 0
      %737 = vmatprep.subr.bf16.mxu0 0
      %738 = vmatpush2.bf16.msra.mxu0 0
      %739 = vmatprep.subr.bf16.mxu0 0
      %740 = vmatpush2.bf16.msra.mxu0 0
      %741 = vmatprep.subr.bf16.mxu0 0
      %742 = vmatpush2.bf16.msra.mxu0 0
      %743 = vmatprep.subr.bf16.mxu0 0
      %744 = vmatpush2.bf16.msra.mxu0 0
      %745 = vmatprep.mubr.bf16.mxu0 0
      %746 = vmatmul.mubr.bf16.gmra.mxu0 %v705
      %v747 = vpop.f32.mrf.mxu0
      %v748 = vadd.f32 %v690, %v747
      %v749 = vpop.f32.mrf.mxu0
      %v750 = vadd.f32 %v692, %v749
      %v751 = vpop.f32.mrf.mxu0
      %v752 = vpop.f32.mrf.mxu0
      %753 = vdwg.mxu0
      %v754 = vadd.f32 %v631, %v748
      %v755 = vadd.f32 %v632, %v750
      %s756 = scalar_lea.vmem %s2, 4
      %v757 = vld [vmem:[%s756] sm:$0x3]
      %s758 = scalar_lea.vmem %s2, 22
      %v759 = vld [vmem:[%s758] sm:$0x3]
      %760 = vrot.lane.b32.xlu0 %v497, 15
      %v761 = vpop.permute.xlu0 %760
      %762 = vrot.lane.b32.xlu0 %v498, 15
      %v763 = vpop.permute.xlu0 %762
      %764 = vrot.lane.b32.xlu0 %v499, 15
      %v765 = vpop.permute.xlu0 %764
      %vm766 = vcmask 121856
      %v767 = vsel %vm766, %v761, %v763
      %v768 = vsel %vm766, %v763, %v765
      %v770 = vsel %vm509, %v759, 0
      %v773 = vsel %vm513, %v767, 0
      %v776 = vsel %vm513, %v768, 0
      %778 = vmatprep.subr.bf16.mxu0 0
      %779 = vmatpush1.bf16.msra.mxu0 0
      %780 = vmatprep.subr.bf16.mxu0 0
      %781 = vmatpush1.bf16.msra.mxu0 0
      %782 = vmatprep.subr.bf16.mxu0 0
      %783 = vmatpush1.bf16.msra.mxu0 0
      %784 = vmatprep.subr.bf16.mxu0 0
      %785 = vmatpush1.bf16.msra.mxu0 0
      %786 = vmatprep.subr.bf16.mxu0 0
      %787 = vmatpush1.bf16.msra.mxu0 0
      %788 = vmatprep.subr.bf16.mxu0 0
      %789 = vmatpush1.bf16.msra.mxu0 0
      %790 = vmatprep.subr.bf16.mxu0 0
      %791 = vmatpush1.bf16.msra.mxu0 0
      %792 = vmatprep.subr.bf16.mxu0 %v776
      %793 = vmatpush1.bf16.msra.mxu0 %v773
      %794 = vmatprep.subr.bf16.mxu0 0
      %795 = vmatpush2.bf16.msra.mxu0 0
      %796 = vmatprep.subr.bf16.mxu0 0
      %797 = vmatpush2.bf16.msra.mxu0 0
      %798 = vmatprep.subr.bf16.mxu0 0
      %799 = vmatpush2.bf16.msra.mxu0 0
      %800 = vmatprep.subr.bf16.mxu0 0
      %801 = vmatpush2.bf16.msra.mxu0 0
      %802 = vmatprep.subr.bf16.mxu0 0
      %803 = vmatpush2.bf16.msra.mxu0 0
      %804 = vmatprep.subr.bf16.mxu0 0
      %805 = vmatpush2.bf16.msra.mxu0 0
      %806 = vmatprep.subr.bf16.mxu0 0
      %807 = vmatpush2.bf16.msra.mxu0 0
      %808 = vmatprep.subr.bf16.mxu0 0
      %809 = vmatpush2.bf16.msra.mxu0 0
      %810 = vmatprep.mubr.bf16.mxu0 0
      %811 = vmatmul.mubr.bf16.gmra.mxu0 %v770
      %v812 = vpop.f32.mrf.mxu0
      %v813 = vadd.f32 0.0, %v812
      %v814 = vpop.f32.mrf.mxu0
      %v815 = vadd.f32 0.0, %v814
      %v816 = vpop.f32.mrf.mxu0
      %v817 = vpop.f32.mrf.mxu0
      %818 = vdwg.mxu0
      %819 = vrot.lane.b32.xlu0 %v566, 15
      %v820 = vpop.permute.xlu0 %819
      %821 = vrot.lane.b32.xlu0 %v567, 15
      %v822 = vpop.permute.xlu0 %821
      %823 = vrot.lane.b32.xlu0 %v568, 15
      %v824 = vpop.permute.xlu0 %823
      %v825 = vsel %vm766, %v820, %v822
      %v826 = vsel %vm766, %v822, %v824
      %v828 = vsel %vm509, %v757, 0
      %v831 = vsel %vm513, %v825, 0
      %v834 = vsel %vm513, %v826, 0
      %836 = vmatprep.subr.bf16.mxu0 0
      %837 = vmatpush1.bf16.msra.mxu0 0
      %838 = vmatprep.subr.bf16.mxu0 0
      %839 = vmatpush1.bf16.msra.mxu0 0
      %840 = vmatprep.subr.bf16.mxu0 0
      %841 = vmatpush1.bf16.msra.mxu0 0
      %842 = vmatprep.subr.bf16.mxu0 0
      %843 = vmatpush1.bf16.msra.mxu0 0
      %844 = vmatprep.subr.bf16.mxu0 0
      %845 = vmatpush1.bf16.msra.mxu0 0
      %846 = vmatprep.subr.bf16.mxu0 0
      %847 = vmatpush1.bf16.msra.mxu0 0
      %848 = vmatprep.subr.bf16.mxu0 0
      %849 = vmatpush1.bf16.msra.mxu0 0
      %850 = vmatprep.subr.bf16.mxu0 %v834
      %851 = vmatpush1.bf16.msra.mxu0 %v831
      %852 = vmatprep.subr.bf16.mxu0 0
      %853 = vmatpush2.bf16.msra.mxu0 0
      %854 = vmatprep.subr.bf16.mxu0 0
      %855 = vmatpush2.bf16.msra.mxu0 0
      %856 = vmatprep.subr.bf16.mxu0 0
      %857 = vmatpush2.bf16.msra.mxu0 0
      %858 = vmatprep.subr.bf16.mxu0 0
      %859 = vmatpush2.bf16.msra.mxu0 0
      %860 = vmatprep.subr.bf16.mxu0 0
      %861 = vmatpush2.bf16.msra.mxu0 0
      %862 = vmatprep.subr.bf16.mxu0 0
      %863 = vmatpush2.bf16.msra.mxu0 0
      %864 = vmatprep.subr.bf16.mxu0 0
      %865 = vmatpush2.bf16.msra.mxu0 0
      %866 = vmatprep.subr.bf16.mxu0 0
      %867 = vmatpush2.bf16.msra.mxu0 0
      %868 = vmatprep.mubr.bf16.mxu0 0
      %869 = vmatmul.mubr.bf16.gmra.mxu0 %v828
      %v870 = vpop.f32.mrf.mxu0
      %v871 = vadd.f32 %v813, %v870
      %v872 = vpop.f32.mrf.mxu0
      %v873 = vadd.f32 %v815, %v872
      %v874 = vpop.f32.mrf.mxu0
      %v875 = vpop.f32.mrf.mxu0
      %876 = vdwg.mxu0
      %v877 = vsel %vm468, 1, 0
      %v878 = vsel %vm469, 1, 0
      %vm879 = vcmp.eq.s32.totalorder %v877, 1
      %vm880 = vcmp.eq.s32.totalorder %v878, 1
      %v881 = vsel %vm879, %v871, 0.0
      %v882 = vsel %vm880, %v873, 0.0
      %v883 = vadd.f32 %v754, %v881
      %v884 = vadd.f32 %v755, %v882
      %s885 = scalar_lea.vmem %s2, 6
      %v886 = vld [vmem:[%s885] sm:$0x3]
      %s887 = scalar_lea.vmem %s2, 24
      %v888 = vld [vmem:[%s887] sm:$0x3]
      %889 = vrot.lane.b32.xlu0 %v497, 1
      %v890 = vpop.permute.xlu0 %889
      %891 = vrot.lane.b32.xlu0 %v498, 1
      %v892 = vpop.permute.xlu0 %891
      %893 = vrot.lane.b32.xlu0 %v499, 1
      %v894 = vpop.permute.xlu0 %893
      %vm895 = vcmask 7168
      %v896 = vsel %vm895, %v890, %v892
      %v897 = vsel %vm895, %v892, %v894
      %v899 = vsel %vm509, %v888, 0
      %v902 = vsel %vm513, %v896, 0
      %v905 = vsel %vm513, %v897, 0
      %907 = vmatprep.subr.bf16.mxu0 0
      %908 = vmatpush1.bf16.msra.mxu0 0
      %909 = vmatprep.subr.bf16.mxu0 0
      %910 = vmatpush1.bf16.msra.mxu0 0
      %911 = vmatprep.subr.bf16.mxu0 0
      %912 = vmatpush1.bf16.msra.mxu0 0
      %913 = vmatprep.subr.bf16.mxu0 0
      %914 = vmatpush1.bf16.msra.mxu0 0
      %915 = vmatprep.subr.bf16.mxu0 0
      %916 = vmatpush1.bf16.msra.mxu0 0
      %917 = vmatprep.subr.bf16.mxu0 0
      %918 = vmatpush1.bf16.msra.mxu0 0
      %919 = vmatprep.subr.bf16.mxu0 0
      %920 = vmatpush1.bf16.msra.mxu0 0
      %921 = vmatprep.subr.bf16.mxu0 %v905
      %922 = vmatpush1.bf16.msra.mxu0 %v902
      %923 = vmatprep.subr.bf16.mxu0 0
      %924 = vmatpush2.bf16.msra.mxu0 0
      %925 = vmatprep.subr.bf16.mxu0 0
      %926 = vmatpush2.bf16.msra.mxu0 0
      %927 = vmatprep.subr.bf16.mxu0 0
      %928 = vmatpush2.bf16.msra.mxu0 0
      %929 = vmatprep.subr.bf16.mxu0 0
      %930 = vmatpush2.bf16.msra.mxu0 0
      %931 = vmatprep.subr.bf16.mxu0 0
      %932 = vmatpush2.bf16.msra.mxu0 0
      %933 = vmatprep.subr.bf16.mxu0 0
      %934 = vmatpush2.bf16.msra.mxu0 0
      %935 = vmatprep.subr.bf16.mxu0 0
      %936 = vmatpush2.bf16.msra.mxu0 0
      %937 = vmatprep.subr.bf16.mxu0 0
      %938 = vmatpush2.bf16.msra.mxu0 0
      %939 = vmatprep.mubr.bf16.mxu0 0
      %940 = vmatmul.mubr.bf16.gmra.mxu0 %v899
      %v941 = vpop.f32.mrf.mxu0
      %v942 = vadd.f32 0.0, %v941
      %v943 = vpop.f32.mrf.mxu0
      %v944 = vadd.f32 0.0, %v943
      %v945 = vpop.f32.mrf.mxu0
      %v946 = vpop.f32.mrf.mxu0
      %947 = vdwg.mxu0
      %948 = vrot.lane.b32.xlu0 %v566, 1
      %v949 = vpop.permute.xlu0 %948
      %950 = vrot.lane.b32.xlu0 %v567, 1
      %v951 = vpop.permute.xlu0 %950
      %952 = vrot.lane.b32.xlu0 %v568, 1
      %v953 = vpop.permute.xlu0 %952
      %v954 = vsel %vm895, %v949, %v951
      %v955 = vsel %vm895, %v951, %v953
      %v957 = vsel %vm509, %v886, 0
      %v960 = vsel %vm513, %v954, 0
      %v963 = vsel %vm513, %v955, 0
      %965 = vmatprep.subr.bf16.mxu0 0
      %966 = vmatpush1.bf16.msra.mxu0 0
      %967 = vmatprep.subr.bf16.mxu0 0
      %968 = vmatpush1.bf16.msra.mxu0 0
      %969 = vmatprep.subr.bf16.mxu0 0
      %970 = vmatpush1.bf16.msra.mxu0 0
      %971 = vmatprep.subr.bf16.mxu0 0
      %972 = vmatpush1.bf16.msra.mxu0 0
      %973 = vmatprep.subr.bf16.mxu0 0
      %974 = vmatpush1.bf16.msra.mxu0 0
      %975 = vmatprep.subr.bf16.mxu0 0
      %976 = vmatpush1.bf16.msra.mxu0 0
      %977 = vmatprep.subr.bf16.mxu0 0
      %978 = vmatpush1.bf16.msra.mxu0 0
      %979 = vmatprep.subr.bf16.mxu0 %v963
      %980 = vmatpush1.bf16.msra.mxu0 %v960
      %981 = vmatprep.subr.bf16.mxu0 0
      %982 = vmatpush2.bf16.msra.mxu0 0
      %983 = vmatprep.subr.bf16.mxu0 0
      %984 = vmatpush2.bf16.msra.mxu0 0
      %985 = vmatprep.subr.bf16.mxu0 0
      %986 = vmatpush2.bf16.msra.mxu0 0
      %987 = vmatprep.subr.bf16.mxu0 0
      %988 = vmatpush2.bf16.msra.mxu0 0
      %989 = vmatprep.subr.bf16.mxu0 0
      %990 = vmatpush2.bf16.msra.mxu0 0
      %991 = vmatprep.subr.bf16.mxu0 0
      %992 = vmatpush2.bf16.msra.mxu0 0
      %993 = vmatprep.subr.bf16.mxu0 0
      %994 = vmatpush2.bf16.msra.mxu0 0
      %995 = vmatprep.subr.bf16.mxu0 0
      %996 = vmatpush2.bf16.msra.mxu0 0
      %997 = vmatprep.mubr.bf16.mxu0 0
      %998 = vmatmul.mubr.bf16.gmra.mxu0 %v957
      %v999 = vpop.f32.mrf.mxu0
      %v1000 = vadd.f32 %v942, %v999
      %v1001 = vpop.f32.mrf.mxu0
      %v1002 = vadd.f32 %v944, %v1001
      %v1003 = vpop.f32.mrf.mxu0
      %v1004 = vpop.f32.mrf.mxu0
      %1005 = vdwg.mxu0
      %v1006 = vsel %vm629, %v1000, 0.0
      %v1007 = vsel %vm630, %v1002, 0.0
      %v1008 = vadd.f32 %v883, %v1006
      %v1009 = vadd.f32 %v884, %v1007
      %s1010 = scalar_lea.vmem %s2, 8
      %v1011 = vld [vmem:[%s1010] sm:$0x3]
      %v1012 = vld [vmem:[%s483 + $0x4] sm:$0xff]
      %s1013 = scalar_lea.vmem %s2, 26
      %v1014 = vld [vmem:[%s1013] sm:$0x3]
      %v1015 = vld [vmem:[%s489 + $0x4] sm:$0xff]
      %v1017 = vunpack.c.l.b16 %v1015
      %v1018 = vunpack.c.h.b16 %v1015
      %v1019 = vpack.c.b16 %v1017, %v1017
      %v1020 = vpack.c.b16 %v1018, %v1018
      %v1022 = vsel %vm509, %v1014, 0
      %v1025 = vsel %vm513, %v1019, 0
      %v1028 = vsel %vm513, %v1020, 0
      %1030 = vmatprep.subr.bf16.mxu0 0
      %1031 = vmatpush1.bf16.msra.mxu0 0
      %1032 = vmatprep.subr.bf16.mxu0 0
      %1033 = vmatpush1.bf16.msra.mxu0 0
      %1034 = vmatprep.subr.bf16.mxu0 0
      %1035 = vmatpush1.bf16.msra.mxu0 0
      %1036 = vmatprep.subr.bf16.mxu0 0
      %1037 = vmatpush1.bf16.msra.mxu0 0
      %1038 = vmatprep.subr.bf16.mxu0 0
      %1039 = vmatpush1.bf16.msra.mxu0 0
      %1040 = vmatprep.subr.bf16.mxu0 0
      %1041 = vmatpush1.bf16.msra.mxu0 0
      %1042 = vmatprep.subr.bf16.mxu0 0
      %1043 = vmatpush1.bf16.msra.mxu0 0
      %1044 = vmatprep.subr.bf16.mxu0 %v1028
      %1045 = vmatpush1.bf16.msra.mxu0 %v1025
      %1046 = vmatprep.subr.bf16.mxu0 0
      %1047 = vmatpush2.bf16.msra.mxu0 0
      %1048 = vmatprep.subr.bf16.mxu0 0
      %1049 = vmatpush2.bf16.msra.mxu0 0
      %1050 = vmatprep.subr.bf16.mxu0 0
      %1051 = vmatpush2.bf16.msra.mxu0 0
      %1052 = vmatprep.subr.bf16.mxu0 0
      %1053 = vmatpush2.bf16.msra.mxu0 0
      %1054 = vmatprep.subr.bf16.mxu0 0
      %1055 = vmatpush2.bf16.msra.mxu0 0
      %1056 = vmatprep.subr.bf16.mxu0 0
      %1057 = vmatpush2.bf16.msra.mxu0 0
      %1058 = vmatprep.subr.bf16.mxu0 0
      %1059 = vmatpush2.bf16.msra.mxu0 0
      %1060 = vmatprep.subr.bf16.mxu0 0
      %1061 = vmatpush2.bf16.msra.mxu0 0
      %1062 = vmatprep.mubr.bf16.mxu0 0
      %1063 = vmatmul.mubr.bf16.gmra.mxu0 %v1022
      %v1064 = vpop.f32.mrf.mxu0
      %v1065 = vadd.f32 0.0, %v1064
      %v1066 = vpop.f32.mrf.mxu0
      %v1067 = vadd.f32 0.0, %v1066
      %v1068 = vpop.f32.mrf.mxu0
      %v1069 = vpop.f32.mrf.mxu0
      %1070 = vdwg.mxu0
      %v1072 = vunpack.c.l.b16 %v1012
      %v1073 = vunpack.c.h.b16 %v1012
      %v1074 = vpack.c.b16 %v1072, %v1072
      %v1075 = vpack.c.b16 %v1073, %v1073
      %v1077 = vsel %vm509, %v1011, 0
      %v1080 = vsel %vm513, %v1074, 0
      %v1083 = vsel %vm513, %v1075, 0
      %1085 = vmatprep.subr.bf16.mxu0 0
      %1086 = vmatpush1.bf16.msra.mxu0 0
      %1087 = vmatprep.subr.bf16.mxu0 0
      %1088 = vmatpush1.bf16.msra.mxu0 0
      %1089 = vmatprep.subr.bf16.mxu0 0
      %1090 = vmatpush1.bf16.msra.mxu0 0
      %1091 = vmatprep.subr.bf16.mxu0 0
      %1092 = vmatpush1.bf16.msra.mxu0 0
      %1093 = vmatprep.subr.bf16.mxu0 0
      %1094 = vmatpush1.bf16.msra.mxu0 0
      %1095 = vmatprep.subr.bf16.mxu0 0
      %1096 = vmatpush1.bf16.msra.mxu0 0
      %1097 = vmatprep.subr.bf16.mxu0 0
      %1098 = vmatpush1.bf16.msra.mxu0 0
      %1099 = vmatprep.subr.bf16.mxu0 %v1083
      %1100 = vmatpush1.bf16.msra.mxu0 %v1080
      %1101 = vmatprep.subr.bf16.mxu0 0
      %1102 = vmatpush2.bf16.msra.mxu0 0
      %1103 = vmatprep.subr.bf16.mxu0 0
      %1104 = vmatpush2.bf16.msra.mxu0 0
      %1105 = vmatprep.subr.bf16.mxu0 0
      %1106 = vmatpush2.bf16.msra.mxu0 0
      %1107 = vmatprep.subr.bf16.mxu0 0
      %1108 = vmatpush2.bf16.msra.mxu0 0
      %1109 = vmatprep.subr.bf16.mxu0 0
      %1110 = vmatpush2.bf16.msra.mxu0 0
      %1111 = vmatprep.subr.bf16.mxu0 0
      %1112 = vmatpush2.bf16.msra.mxu0 0
      %1113 = vmatprep.subr.bf16.mxu0 0
      %1114 = vmatpush2.bf16.msra.mxu0 0
      %1115 = vmatprep.subr.bf16.mxu0 0
      %1116 = vmatpush2.bf16.msra.mxu0 0
      %1117 = vmatprep.mubr.bf16.mxu0 0
      %1118 = vmatmul.mubr.bf16.gmra.mxu0 %v1077
      %v1119 = vpop.f32.mrf.mxu0
      %v1120 = vadd.f32 %v1065, %v1119
      %v1121 = vpop.f32.mrf.mxu0
      %v1122 = vadd.f32 %v1067, %v1121
      %v1123 = vpop.f32.mrf.mxu0
      %v1124 = vpop.f32.mrf.mxu0
      %1125 = vdwg.mxu0
      %v1126 = vadd.f32 %v1008, %v1120
      %v1127 = vadd.f32 %v1009, %v1122
      %s1128 = scalar_lea.vmem %s2, 10
      %v1129 = vld [vmem:[%s1128] sm:$0x3]
      %v1130 = vld [vmem:[%s483 + $0x4] sm:$0xff]
      %v1131 = vld [vmem:[%s483 + $0xc] sm:$0xf]
      %s1132 = scalar_lea.vmem %s2, 28
      %v1133 = vld [vmem:[%s1132] sm:$0x3]
      %v1134 = vld [vmem:[%s489 + $0x4] sm:$0xff]
      %v1135 = vld [vmem:[%s489 + $0xc] sm:$0xf]
      %v1138 = vunpack.c.l.b16 %v1134
      %v1139 = vunpack.c.h.b16 %v1134
      %v1140 = vunpack.c.l.b16 %v1135
      %v1141 = vpack.c.b16 %v1138, %v1138
      %v1142 = vpack.c.b16 %v1139, %v1139
      %v1143 = vpack.c.b16 %v1140, %v1140
      %1144 = vrot.lane.b32.xlu0 %v1141, 127
      %v1145 = vpop.permute.xlu0 %1144
      %1146 = vrot.lane.b32.xlu0 %v1142, 127
      %v1147 = vpop.permute.xlu0 %1146
      %1148 = vrot.lane.b32.xlu0 %v1143, 127
      %v1149 = vpop.permute.xlu0 %1148
      %vm1150 = vcmask 1039360
      %v1151 = vsel %vm1150, %v1145, %v1147
      %v1152 = vsel %vm1150, %v1147, %v1149
      %v1154 = vsel %vm509, %v1133, 0
      %v1157 = vsel %vm513, %v1151, 0
      %v1160 = vsel %vm513, %v1152, 0
      %1162 = vmatprep.subr.bf16.mxu0 0
      %1163 = vmatpush1.bf16.msra.mxu0 0
      %1164 = vmatprep.subr.bf16.mxu0 0
      %1165 = vmatpush1.bf16.msra.mxu0 0
      %1166 = vmatprep.subr.bf16.mxu0 0
      %1167 = vmatpush1.bf16.msra.mxu0 0
      %1168 = vmatprep.subr.bf16.mxu0 0
      %1169 = vmatpush1.bf16.msra.mxu0 0
      %1170 = vmatprep.subr.bf16.mxu0 0
      %1171 = vmatpush1.bf16.msra.mxu0 0
      %1172 = vmatprep.subr.bf16.mxu0 0
      %1173 = vmatpush1.bf16.msra.mxu0 0
      %1174 = vmatprep.subr.bf16.mxu0 0
      %1175 = vmatpush1.bf16.msra.mxu0 0
      %1176 = vmatprep.subr.bf16.mxu0 %v1160
      %1177 = vmatpush1.bf16.msra.mxu0 %v1157
      %1178 = vmatprep.subr.bf16.mxu0 0
      %1179 = vmatpush2.bf16.msra.mxu0 0
      %1180 = vmatprep.subr.bf16.mxu0 0
      %1181 = vmatpush2.bf16.msra.mxu0 0
      %1182 = vmatprep.subr.bf16.mxu0 0
      %1183 = vmatpush2.bf16.msra.mxu0 0
      %1184 = vmatprep.subr.bf16.mxu0 0
      %1185 = vmatpush2.bf16.msra.mxu0 0
      %1186 = vmatprep.subr.bf16.mxu0 0
      %1187 = vmatpush2.bf16.msra.mxu0 0
      %1188 = vmatprep.subr.bf16.mxu0 0
      %1189 = vmatpush2.bf16.msra.mxu0 0
      %1190 = vmatprep.subr.bf16.mxu0 0
      %1191 = vmatpush2.bf16.msra.mxu0 0
      %1192 = vmatprep.subr.bf16.mxu0 0
      %1193 = vmatpush2.bf16.msra.mxu0 0
      %1194 = vmatprep.mubr.bf16.mxu0 0
      %1195 = vmatmul.mubr.bf16.gmra.mxu0 %v1154
      %v1196 = vpop.f32.mrf.mxu0
      %v1197 = vadd.f32 0.0, %v1196
      %v1198 = vpop.f32.mrf.mxu0
      %v1199 = vadd.f32 0.0, %v1198
      %v1200 = vpop.f32.mrf.mxu0
      %v1201 = vpop.f32.mrf.mxu0
      %1202 = vdwg.mxu0
      %v1205 = vunpack.c.l.b16 %v1130
      %v1206 = vunpack.c.h.b16 %v1130
      %v1207 = vunpack.c.l.b16 %v1131
      %v1208 = vpack.c.b16 %v1205, %v1205
      %v1209 = vpack.c.b16 %v1206, %v1206
      %v1210 = vpack.c.b16 %v1207, %v1207
      %1211 = vrot.lane.b32.xlu0 %v1208, 127
      %v1212 = vpop.permute.xlu0 %1211
      %1213 = vrot.lane.b32.xlu0 %v1209, 127
      %v1214 = vpop.permute.xlu0 %1213
      %1215 = vrot.lane.b32.xlu0 %v1210, 127
      %v1216 = vpop.permute.xlu0 %1215
      %v1217 = vsel %vm1150, %v1212, %v1214
      %v1218 = vsel %vm1150, %v1214, %v1216
      %v1220 = vsel %vm509, %v1129, 0
      %v1223 = vsel %vm513, %v1217, 0
      %v1226 = vsel %vm513, %v1218, 0
      %1228 = vmatprep.subr.bf16.mxu0 0
      %1229 = vmatpush1.bf16.msra.mxu0 0
      %1230 = vmatprep.subr.bf16.mxu0 0
      %1231 = vmatpush1.bf16.msra.mxu0 0
      %1232 = vmatprep.subr.bf16.mxu0 0
      %1233 = vmatpush1.bf16.msra.mxu0 0
      %1234 = vmatprep.subr.bf16.mxu0 0
      %1235 = vmatpush1.bf16.msra.mxu0 0
      %1236 = vmatprep.subr.bf16.mxu0 0
      %1237 = vmatpush1.bf16.msra.mxu0 0
      %1238 = vmatprep.subr.bf16.mxu0 0
      %1239 = vmatpush1.bf16.msra.mxu0 0
      %1240 = vmatprep.subr.bf16.mxu0 0
      %1241 = vmatpush1.bf16.msra.mxu0 0
      %1242 = vmatprep.subr.bf16.mxu0 %v1226
      %1243 = vmatpush1.bf16.msra.mxu0 %v1223
      %1244 = vmatprep.subr.bf16.mxu0 0
      %1245 = vmatpush2.bf16.msra.mxu0 0
      %1246 = vmatprep.subr.bf16.mxu0 0
      %1247 = vmatpush2.bf16.msra.mxu0 0
      %1248 = vmatprep.subr.bf16.mxu0 0
      %1249 = vmatpush2.bf16.msra.mxu0 0
      %1250 = vmatprep.subr.bf16.mxu0 0
      %1251 = vmatpush2.bf16.msra.mxu0 0
      %1252 = vmatprep.subr.bf16.mxu0 0
      %1253 = vmatpush2.bf16.msra.mxu0 0
      %1254 = vmatprep.subr.bf16.mxu0 0
      %1255 = vmatpush2.bf16.msra.mxu0 0
      %1256 = vmatprep.subr.bf16.mxu0 0
      %1257 = vmatpush2.bf16.msra.mxu0 0
      %1258 = vmatprep.subr.bf16.mxu0 0
      %1259 = vmatpush2.bf16.msra.mxu0 0
      %1260 = vmatprep.mubr.bf16.mxu0 0
      %1261 = vmatmul.mubr.bf16.gmra.mxu0 %v1220
      %v1262 = vpop.f32.mrf.mxu0
      %v1263 = vadd.f32 %v1197, %v1262
      %v1264 = vpop.f32.mrf.mxu0
      %v1265 = vadd.f32 %v1199, %v1264
      %v1266 = vpop.f32.mrf.mxu0
      %v1267 = vpop.f32.mrf.mxu0
      %1268 = vdwg.mxu0
      %v1269 = vsel %vm879, %v1263, 0.0
      %v1270 = vsel %vm880, %v1265, 0.0
      %v1271 = vadd.f32 %v1126, %v1269
      %v1272 = vadd.f32 %v1127, %v1270
      %s1273 = scalar_lea.vmem %s2, 12
      %v1274 = vld [vmem:[%s1273] sm:$0x3]
      %s1275 = scalar_lea.vmem %s2, 30
      %v1276 = vld [vmem:[%s1275] sm:$0x3]
      %1277 = vrot.lane.b32.xlu0 %v1141, 113
      %v1278 = vpop.permute.xlu0 %1277
      %1279 = vrot.lane.b32.xlu0 %v1142, 113
      %v1280 = vpop.permute.xlu0 %1279
      %1281 = vrot.lane.b32.xlu0 %v1143, 113
      %v1282 = vpop.permute.xlu0 %1281
      %vm1283 = vcmask 924672
      %v1284 = vsel %vm1283, %v1278, %v1280
      %v1285 = vsel %vm1283, %v1280, %v1282
      %v1287 = vsel %vm509, %v1276, 0
      %v1290 = vsel %vm513, %v1284, 0
      %v1293 = vsel %vm513, %v1285, 0
      %1295 = vmatprep.subr.bf16.mxu0 0
      %1296 = vmatpush1.bf16.msra.mxu0 0
      %1297 = vmatprep.subr.bf16.mxu0 0
      %1298 = vmatpush1.bf16.msra.mxu0 0
      %1299 = vmatprep.subr.bf16.mxu0 0
      %1300 = vmatpush1.bf16.msra.mxu0 0
      %1301 = vmatprep.subr.bf16.mxu0 0
      %1302 = vmatpush1.bf16.msra.mxu0 0
      %1303 = vmatprep.subr.bf16.mxu0 0
      %1304 = vmatpush1.bf16.msra.mxu0 0
      %1305 = vmatprep.subr.bf16.mxu0 0
      %1306 = vmatpush1.bf16.msra.mxu0 0
      %1307 = vmatprep.subr.bf16.mxu0 0
      %1308 = vmatpush1.bf16.msra.mxu0 0
      %1309 = vmatprep.subr.bf16.mxu0 %v1293
      %1310 = vmatpush1.bf16.msra.mxu0 %v1290
      %1311 = vmatprep.subr.bf16.mxu0 0
      %1312 = vmatpush2.bf16.msra.mxu0 0
      %1313 = vmatprep.subr.bf16.mxu0 0
      %1314 = vmatpush2.bf16.msra.mxu0 0
      %1315 = vmatprep.subr.bf16.mxu0 0
      %1316 = vmatpush2.bf16.msra.mxu0 0
      %1317 = vmatprep.subr.bf16.mxu0 0
      %1318 = vmatpush2.bf16.msra.mxu0 0
      %1319 = vmatprep.subr.bf16.mxu0 0
      %1320 = vmatpush2.bf16.msra.mxu0 0
      %1321 = vmatprep.subr.bf16.mxu0 0
      %1322 = vmatpush2.bf16.msra.mxu0 0
      %1323 = vmatprep.subr.bf16.mxu0 0
      %1324 = vmatpush2.bf16.msra.mxu0 0
      %1325 = vmatprep.subr.bf16.mxu0 0
      %1326 = vmatpush2.bf16.msra.mxu0 0
      %1327 = vmatprep.mubr.bf16.mxu0 0
      %1328 = vmatmul.mubr.bf16.gmra.mxu0 %v1287
      %v1329 = vpop.f32.mrf.mxu0
      %v1330 = vadd.f32 0.0, %v1329
      %v1331 = vpop.f32.mrf.mxu0
      %v1332 = vadd.f32 0.0, %v1331
      %v1333 = vpop.f32.mrf.mxu0
      %v1334 = vpop.f32.mrf.mxu0
      %1335 = vdwg.mxu0
      %1336 = vrot.lane.b32.xlu0 %v1208, 113
      %v1337 = vpop.permute.xlu0 %1336
      %1338 = vrot.lane.b32.xlu0 %v1209, 113
      %v1339 = vpop.permute.xlu0 %1338
      %1340 = vrot.lane.b32.xlu0 %v1210, 113
      %v1341 = vpop.permute.xlu0 %1340
      %v1342 = vsel %vm1283, %v1337, %v1339
      %v1343 = vsel %vm1283, %v1339, %v1341
      %v1345 = vsel %vm509, %v1274, 0
      %v1348 = vsel %vm513, %v1342, 0
      %v1351 = vsel %vm513, %v1343, 0
      %1353 = vmatprep.subr.bf16.mxu0 0
      %1354 = vmatpush1.bf16.msra.mxu0 0
      %1355 = vmatprep.subr.bf16.mxu0 0
      %1356 = vmatpush1.bf16.msra.mxu0 0
      %1357 = vmatprep.subr.bf16.mxu0 0
      %1358 = vmatpush1.bf16.msra.mxu0 0
      %1359 = vmatprep.subr.bf16.mxu0 0
      %1360 = vmatpush1.bf16.msra.mxu0 0
      %1361 = vmatprep.subr.bf16.mxu0 0
      %1362 = vmatpush1.bf16.msra.mxu0 0
      %1363 = vmatprep.subr.bf16.mxu0 0
      %1364 = vmatpush1.bf16.msra.mxu0 0
      %1365 = vmatprep.subr.bf16.mxu0 0
      %1366 = vmatpush1.bf16.msra.mxu0 0
      %1367 = vmatprep.subr.bf16.mxu0 %v1351
      %1368 = vmatpush1.bf16.msra.mxu0 %v1348
      %1369 = vmatprep.subr.bf16.mxu0 0
      %1370 = vmatpush2.bf16.msra.mxu0 0
      %1371 = vmatprep.subr.bf16.mxu0 0
      %1372 = vmatpush2.bf16.msra.mxu0 0
      %1373 = vmatprep.subr.bf16.mxu0 0
      %1374 = vmatpush2.bf16.msra.mxu0 0
      %1375 = vmatprep.subr.bf16.mxu0 0
      %1376 = vmatpush2.bf16.msra.mxu0 0
      %1377 = vmatprep.subr.bf16.mxu0 0
      %1378 = vmatpush2.bf16.msra.mxu0 0
      %1379 = vmatprep.subr.bf16.mxu0 0
      %1380 = vmatpush2.bf16.msra.mxu0 0
      %1381 = vmatprep.subr.bf16.mxu0 0
      %1382 = vmatpush2.bf16.msra.mxu0 0
      %1383 = vmatprep.subr.bf16.mxu0 0
      %1384 = vmatpush2.bf16.msra.mxu0 0
      %1385 = vmatprep.mubr.bf16.mxu0 0
      %1386 = vmatmul.mubr.bf16.gmra.mxu0 %v1345
      %v1387 = vpop.f32.mrf.mxu0
      %v1388 = vadd.f32 %v1330, %v1387
      %v1389 = vpop.f32.mrf.mxu0
      %v1390 = vadd.f32 %v1332, %v1389
      %v1391 = vpop.f32.mrf.mxu0
      %v1392 = vpop.f32.mrf.mxu0
      %1393 = vdwg.mxu0
      %v1394 = vsel %vm629, %v1388, 0.0
      %v1395 = vsel %vm630, %v1390, 0.0
      %v1396 = vadd.f32 %v1271, %v1394
      %v1397 = vadd.f32 %v1272, %v1395
      %s1398 = scalar_lea.vmem %s2, 14
      %v1399 = vld [vmem:[%s1398] sm:$0x3]
      %s1400 = scalar_lea.vmem %s2, 32
      %v1401 = vld [vmem:[%s1400] sm:$0x3]
      %1402 = vrot.lane.b32.xlu0 %v1141, 112
      %v1403 = vpop.permute.xlu0 %1402
      %1404 = vrot.lane.b32.xlu0 %v1142, 112
      %v1405 = vpop.permute.xlu0 %1404
      %1406 = vrot.lane.b32.xlu0 %v1143, 112
      %v1407 = vpop.permute.xlu0 %1406
      %vm1408 = vcmask 916480
      %v1409 = vsel %vm1408, %v1403, %v1405
      %v1410 = vsel %vm1408, %v1405, %v1407
      %v1412 = vsel %vm509, %v1401, 0
      %v1415 = vsel %vm513, %v1409, 0
      %v1418 = vsel %vm513, %v1410, 0
      %1420 = vmatprep.subr.bf16.mxu0 0
      %1421 = vmatpush1.bf16.msra.mxu0 0
      %1422 = vmatprep.subr.bf16.mxu0 0
      %1423 = vmatpush1.bf16.msra.mxu0 0
      %1424 = vmatprep.subr.bf16.mxu0 0
      %1425 = vmatpush1.bf16.msra.mxu0 0
      %1426 = vmatprep.subr.bf16.mxu0 0
      %1427 = vmatpush1.bf16.msra.mxu0 0
      %1428 = vmatprep.subr.bf16.mxu0 0
      %1429 = vmatpush1.bf16.msra.mxu0 0
      %1430 = vmatprep.subr.bf16.mxu0 0
      %1431 = vmatpush1.bf16.msra.mxu0 0
      %1432 = vmatprep.subr.bf16.mxu0 0
      %1433 = vmatpush1.bf16.msra.mxu0 0
      %1434 = vmatprep.subr.bf16.mxu0 %v1418
      %1435 = vmatpush1.bf16.msra.mxu0 %v1415
      %1436 = vmatprep.subr.bf16.mxu0 0
      %1437 = vmatpush2.bf16.msra.mxu0 0
      %1438 = vmatprep.subr.bf16.mxu0 0
      %1439 = vmatpush2.bf16.msra.mxu0 0
      %1440 = vmatprep.subr.bf16.mxu0 0
      %1441 = vmatpush2.bf16.msra.mxu0 0
      %1442 = vmatprep.subr.bf16.mxu0 0
      %1443 = vmatpush2.bf16.msra.mxu0 0
      %1444 = vmatprep.subr.bf16.mxu0 0
      %1445 = vmatpush2.bf16.msra.mxu0 0
      %1446 = vmatprep.subr.bf16.mxu0 0
      %1447 = vmatpush2.bf16.msra.mxu0 0
      %1448 = vmatprep.subr.bf16.mxu0 0
      %1449 = vmatpush2.bf16.msra.mxu0 0
      %1450 = vmatprep.subr.bf16.mxu0 0
      %1451 = vmatpush2.bf16.msra.mxu0 0
      %1452 = vmatprep.mubr.bf16.mxu0 0
      %1453 = vmatmul.mubr.bf16.gmra.mxu0 %v1412
      %v1454 = vpop.f32.mrf.mxu0
      %v1455 = vadd.f32 0.0, %v1454
      %v1456 = vpop.f32.mrf.mxu0
      %v1457 = vadd.f32 0.0, %v1456
      %v1458 = vpop.f32.mrf.mxu0
      %v1459 = vpop.f32.mrf.mxu0
      %1460 = vdwg.mxu0
      %1461 = vrot.lane.b32.xlu0 %v1208, 112
      %v1462 = vpop.permute.xlu0 %1461
      %1463 = vrot.lane.b32.xlu0 %v1209, 112
      %v1464 = vpop.permute.xlu0 %1463
      %1465 = vrot.lane.b32.xlu0 %v1210, 112
      %v1466 = vpop.permute.xlu0 %1465
      %v1467 = vsel %vm1408, %v1462, %v1464
      %v1468 = vsel %vm1408, %v1464, %v1466
      %v1470 = vsel %vm509, %v1399, 0
      %v1473 = vsel %vm513, %v1467, 0
      %v1476 = vsel %vm513, %v1468, 0
      %1478 = vmatprep.subr.bf16.mxu0 0
      %1479 = vmatpush1.bf16.msra.mxu0 0
      %1480 = vmatprep.subr.bf16.mxu0 0
      %1481 = vmatpush1.bf16.msra.mxu0 0
      %1482 = vmatprep.subr.bf16.mxu0 0
      %1483 = vmatpush1.bf16.msra.mxu0 0
      %1484 = vmatprep.subr.bf16.mxu0 0
      %1485 = vmatpush1.bf16.msra.mxu0 0
      %1486 = vmatprep.subr.bf16.mxu0 0
      %1487 = vmatpush1.bf16.msra.mxu0 0
      %1488 = vmatprep.subr.bf16.mxu0 0
      %1489 = vmatpush1.bf16.msra.mxu0 0
      %1490 = vmatprep.subr.bf16.mxu0 0
      %1491 = vmatpush1.bf16.msra.mxu0 0
      %1492 = vmatprep.subr.bf16.mxu0 %v1476
      %1493 = vmatpush1.bf16.msra.mxu0 %v1473
      %1494 = vmatprep.subr.bf16.mxu0 0
      %1495 = vmatpush2.bf16.msra.mxu0 0
      %1496 = vmatprep.subr.bf16.mxu0 0
      %1497 = vmatpush2.bf16.msra.mxu0 0
      %1498 = vmatprep.subr.bf16.mxu0 0
      %1499 = vmatpush2.bf16.msra.mxu0 0
      %1500 = vmatprep.subr.bf16.mxu0 0
      %1501 = vmatpush2.bf16.msra.mxu0 0
      %1502 = vmatprep.subr.bf16.mxu0 0
      %1503 = vmatpush2.bf16.msra.mxu0 0
      %1504 = vmatprep.subr.bf16.mxu0 0
      %1505 = vmatpush2.bf16.msra.mxu0 0
      %1506 = vmatprep.subr.bf16.mxu0 0
      %1507 = vmatpush2.bf16.msra.mxu0 0
      %1508 = vmatprep.subr.bf16.mxu0 0
      %1509 = vmatpush2.bf16.msra.mxu0 0
      %1510 = vmatprep.mubr.bf16.mxu0 0
      %1511 = vmatmul.mubr.bf16.gmra.mxu0 %v1470
      %v1512 = vpop.f32.mrf.mxu0
      %v1513 = vadd.f32 %v1455, %v1512
      %v1514 = vpop.f32.mrf.mxu0
      %v1515 = vadd.f32 %v1457, %v1514
      %v1516 = vpop.f32.mrf.mxu0
      %v1517 = vpop.f32.mrf.mxu0
      %1518 = vdwg.mxu0
      %v1519 = vadd.f32 %v1396, %v1513
      %v1520 = vadd.f32 %v1397, %v1515
      %s1521 = scalar_lea.vmem %s2, 16
      %v1522 = vld [vmem:[%s1521] sm:$0x3]
      %s1523 = scalar_lea.vmem %s2, 34
      %v1524 = vld [vmem:[%s1523] sm:$0x3]
      %1525 = vrot.lane.b32.xlu0 %v1141, 111
      %v1526 = vpop.permute.xlu0 %1525
      %1527 = vrot.lane.b32.xlu0 %v1142, 111
      %v1528 = vpop.permute.xlu0 %1527
      %1529 = vrot.lane.b32.xlu0 %v1143, 111
      %v1530 = vpop.permute.xlu0 %1529
      %vm1531 = vcmask 908288
      %v1532 = vsel %vm1531, %v1526, %v1528
      %v1533 = vsel %vm1531, %v1528, %v1530
      %v1535 = vsel %vm509, %v1524, 0
      %v1538 = vsel %vm513, %v1532, 0
      %v1541 = vsel %vm513, %v1533, 0
      %1543 = vmatprep.subr.bf16.mxu0 0
      %1544 = vmatpush1.bf16.msra.mxu0 0
      %1545 = vmatprep.subr.bf16.mxu0 0
      %1546 = vmatpush1.bf16.msra.mxu0 0
      %1547 = vmatprep.subr.bf16.mxu0 0
      %1548 = vmatpush1.bf16.msra.mxu0 0
      %1549 = vmatprep.subr.bf16.mxu0 0
      %1550 = vmatpush1.bf16.msra.mxu0 0
      %1551 = vmatprep.subr.bf16.mxu0 0
      %1552 = vmatpush1.bf16.msra.mxu0 0
      %1553 = vmatprep.subr.bf16.mxu0 0
      %1554 = vmatpush1.bf16.msra.mxu0 0
      %1555 = vmatprep.subr.bf16.mxu0 0
      %1556 = vmatpush1.bf16.msra.mxu0 0
      %1557 = vmatprep.subr.bf16.mxu0 %v1541
      %1558 = vmatpush1.bf16.msra.mxu0 %v1538
      %1559 = vmatprep.subr.bf16.mxu0 0
      %1560 = vmatpush2.bf16.msra.mxu0 0
      %1561 = vmatprep.subr.bf16.mxu0 0
      %1562 = vmatpush2.bf16.msra.mxu0 0
      %1563 = vmatprep.subr.bf16.mxu0 0
      %1564 = vmatpush2.bf16.msra.mxu0 0
      %1565 = vmatprep.subr.bf16.mxu0 0
      %1566 = vmatpush2.bf16.msra.mxu0 0
      %1567 = vmatprep.subr.bf16.mxu0 0
      %1568 = vmatpush2.bf16.msra.mxu0 0
      %1569 = vmatprep.subr.bf16.mxu0 0
      %1570 = vmatpush2.bf16.msra.mxu0 0
      %1571 = vmatprep.subr.bf16.mxu0 0
      %1572 = vmatpush2.bf16.msra.mxu0 0
      %1573 = vmatprep.subr.bf16.mxu0 0
      %1574 = vmatpush2.bf16.msra.mxu0 0
      %1575 = vmatprep.mubr.bf16.mxu0 0
      %1576 = vmatmul.mubr.bf16.gmra.mxu0 %v1535
      %v1577 = vpop.f32.mrf.mxu0
      %v1578 = vadd.f32 0.0, %v1577
      %v1579 = vpop.f32.mrf.mxu0
      %v1580 = vadd.f32 0.0, %v1579
      %v1581 = vpop.f32.mrf.mxu0
      %v1582 = vpop.f32.mrf.mxu0
      %1583 = vdwg.mxu0
      %1584 = vrot.lane.b32.xlu0 %v1208, 111
      %v1585 = vpop.permute.xlu0 %1584
      %1586 = vrot.lane.b32.xlu0 %v1209, 111
      %v1587 = vpop.permute.xlu0 %1586
      %1588 = vrot.lane.b32.xlu0 %v1210, 111
      %v1589 = vpop.permute.xlu0 %1588
      %v1590 = vsel %vm1531, %v1585, %v1587
      %v1591 = vsel %vm1531, %v1587, %v1589
      %v1593 = vsel %vm509, %v1522, 0
      %v1596 = vsel %vm513, %v1590, 0
      %v1599 = vsel %vm513, %v1591, 0
      %1601 = vmatprep.subr.bf16.mxu0 0
      %1602 = vmatpush1.bf16.msra.mxu0 0
      %1603 = vmatprep.subr.bf16.mxu0 0
      %1604 = vmatpush1.bf16.msra.mxu0 0
      %1605 = vmatprep.subr.bf16.mxu0 0
      %1606 = vmatpush1.bf16.msra.mxu0 0
      %1607 = vmatprep.subr.bf16.mxu0 0
      %1608 = vmatpush1.bf16.msra.mxu0 0
      %1609 = vmatprep.subr.bf16.mxu0 0
      %1610 = vmatpush1.bf16.msra.mxu0 0
      %1611 = vmatprep.subr.bf16.mxu0 0
      %1612 = vmatpush1.bf16.msra.mxu0 0
      %1613 = vmatprep.subr.bf16.mxu0 0
      %1614 = vmatpush1.bf16.msra.mxu0 0
      %1615 = vmatprep.subr.bf16.mxu0 %v1599
      %1616 = vmatpush1.bf16.msra.mxu0 %v1596
      %1617 = vmatprep.subr.bf16.mxu0 0
      %1618 = vmatpush2.bf16.msra.mxu0 0
      %1619 = vmatprep.subr.bf16.mxu0 0
      %1620 = vmatpush2.bf16.msra.mxu0 0
      %1621 = vmatprep.subr.bf16.mxu0 0
      %1622 = vmatpush2.bf16.msra.mxu0 0
      %1623 = vmatprep.subr.bf16.mxu0 0
      %1624 = vmatpush2.bf16.msra.mxu0 0
      %1625 = vmatprep.subr.bf16.mxu0 0
      %1626 = vmatpush2.bf16.msra.mxu0 0
      %1627 = vmatprep.subr.bf16.mxu0 0
      %1628 = vmatpush2.bf16.msra.mxu0 0
      %1629 = vmatprep.subr.bf16.mxu0 0
      %1630 = vmatpush2.bf16.msra.mxu0 0
      %1631 = vmatprep.subr.bf16.mxu0 0
      %1632 = vmatpush2.bf16.msra.mxu0 0
      %1633 = vmatprep.mubr.bf16.mxu0 0
      %1634 = vmatmul.mubr.bf16.gmra.mxu0 %v1593
      %v1635 = vpop.f32.mrf.mxu0
      %v1636 = vadd.f32 %v1578, %v1635
      %v1637 = vpop.f32.mrf.mxu0
      %v1638 = vadd.f32 %v1580, %v1637
      %v1639 = vpop.f32.mrf.mxu0
      %v1640 = vpop.f32.mrf.mxu0
      %1641 = vdwg.mxu0
      %v1642 = vsel %vm879, %v1636, 0.0
      %v1643 = vsel %vm880, %v1638, 0.0
      %v1644 = vadd.f32 %v1519, %v1642
      %v1645 = vadd.f32 %v1520, %v1643
      %v1646 = vld [vmem:[%s3] sm:$0xf]
      %1648 = vset.pattern.permute.xlu0 0
      %1649 = vperm.xlu0 %1648, %v1646
      %v1650 = vpop.permute.xlu0 %1649
      %v1652 = vmul.f32 %v1644, %v1650
      %v1653 = vmul.f32 %v1645, %v1650
      %v1654 = vld [vmem:[%s4] sm:$0xf]
      %1656 = vset.pattern.permute.xlu0 0
      %1657 = vperm.xlu0 %1656, %v1654
      %v1658 = vpop.permute.xlu0 %1657
      %v1660 = vadd.f32 %v1652, %v1658
      %v1661 = vadd.f32 %v1653, %v1658
      %v1662 = vmax.f32 %v1660, 0.0
      %v1663 = vmax.f32 %v1661, 0.0
      %v1664 = vld [vmem:[%s5] sm:$0xf]
      %v1665 = vld [vmem:[%s5 + $0x4] sm:$0xf]
      %v1666 = vld [vmem:[%s5 + $0x8] sm:$0xf]
      %v1667 = vld [vmem:[%s5 + $0xc] sm:$0xf]
      %v1668 = vld [vmem:[%s5 + $0x10] sm:$0x3]
      %v1669 = vpack.c.bf16 %v1662, %v1662
      %v1670 = vpack.c.bf16 %v1663, %v1663
      %v1671 = vld [vmem:[%s6] sm:$0xff]
      %v1672 = vld [vmem:[%s6 + $0x8] sm:$0xff]
      %v1673 = vld [vmem:[%s6 + $0x10] sm:$0xff]
      %v1674 = vld [vmem:[%s6 + $0x18] sm:$0xff]
      %v1675 = vld [vmem:[%s6 + $0x20] sm:$0xf]
      %1677 = vset.pattern.permute.xlu0 0
      %1678 = vperm.xlu0 %1677, %v1671
      %v1679 = vpop.permute.xlu0 %1678
      %1682 = vset.pattern.permute.xlu0 0
      %1683 = vperm.xlu0 %1682, %v1672
      %v1684 = vpop.permute.xlu0 %1683
      %1687 = vset.pattern.permute.xlu0 0
      %1688 = vperm.xlu0 %1687, %v1673
      %v1689 = vpop.permute.xlu0 %1688
      %1692 = vset.pattern.permute.xlu0 0
      %1693 = vperm.xlu0 %1692, %v1674
      %v1694 = vpop.permute.xlu0 %1693
      %1697 = vset.pattern.permute.xlu0 0
      %1698 = vperm.xlu0 %1697, %v1675
      %v1699 = vpop.permute.xlu0 %1698
      %v1706 = vunpack.c.l.b16 %v1664
      %v1707 = vunpack.c.l.b16 %v1665
      %v1708 = vunpack.c.l.b16 %v1666
      %v1709 = vunpack.c.l.b16 %v1667
      %v1710 = vunpack.c.l.b16 %v1668
      %v1711 = vpack.c.b16 %v1707, %v1706
      %v1712 = vpack.c.b16 %v1709, %v1708
      %v1713 = vpack.c.b16 %v1710, %v1710
      %vm1714 = vcmask 31744
      %v1716 = vsel %vm1714, %v1711, 0
      %v1719 = vsel %vm1714, %v1712, 0
      %v1722 = vsel %vm1714, %v1713, 0
      %vm1724 = vcmask 1041408
      %v1726 = vsel %vm1724, %v1669, 0
      %v1729 = vsel %vm1724, %v1670, 0
      %1731 = vmatprep.subr.bf16.mxu0 0
      %1732 = vmatpush1.bf16.msra.mxu0 0
      %1733 = vmatprep.subr.bf16.mxu0 0
      %1734 = vmatpush1.bf16.msra.mxu0 0
      %1735 = vmatprep.subr.bf16.mxu0 0
      %1736 = vmatpush1.bf16.msra.mxu0 0
      %1737 = vmatprep.subr.bf16.mxu0 0
      %1738 = vmatpush1.bf16.msra.mxu0 0
      %1739 = vmatprep.subr.bf16.mxu0 0
      %1740 = vmatpush1.bf16.msra.mxu0 0
      %1741 = vmatprep.subr.bf16.mxu0 0
      %1742 = vmatpush1.bf16.msra.mxu0 0
      %1743 = vmatprep.subr.bf16.mxu0 0
      %1744 = vmatpush1.bf16.msra.mxu0 0
      %1745 = vmatprep.subr.bf16.mxu0 %v1729
      %1746 = vmatpush1.bf16.msra.mxu0 %v1726
      %1747 = vmatprep.subr.bf16.mxu0 0
      %1748 = vmatpush2.bf16.msra.mxu0 0
      %1749 = vmatprep.subr.bf16.mxu0 0
      %1750 = vmatpush2.bf16.msra.mxu0 0
      %1751 = vmatprep.subr.bf16.mxu0 0
      %1752 = vmatpush2.bf16.msra.mxu0 0
      %1753 = vmatprep.subr.bf16.mxu0 0
      %1754 = vmatpush2.bf16.msra.mxu0 0
      %1755 = vmatprep.subr.bf16.mxu0 0
      %1756 = vmatpush2.bf16.msra.mxu0 0
      %1757 = vmatprep.subr.bf16.mxu0 0
      %1758 = vmatpush2.bf16.msra.mxu0 0
      %1759 = vmatprep.subr.bf16.mxu0 0
      %1760 = vmatpush2.bf16.msra.mxu0 0
      %1761 = vmatprep.subr.bf16.mxu0 0
      %1762 = vmatpush2.bf16.msra.mxu0 0
      %1763 = vmatprep.mubr.bf16.mxu0 0
      %1764 = vmatmul.mubr.bf16.gmra.mxu0 %v1716
      %v1765 = vpop.f32.mrf.mxu0
      %v1766 = vadd.f32 %v1679, %v1765
      %v1767 = vpop.f32.mrf.mxu0
      %v1768 = vadd.f32 %v1679, %v1767
      %v1769 = vpop.f32.mrf.mxu0
      %v1770 = vadd.f32 %v1684, %v1769
      %v1771 = vpop.f32.mrf.mxu0
      %v1772 = vadd.f32 %v1684, %v1771
      %1773 = vmatprep.mubr.bf16.mxu0 0
      %1774 = vmatmul.mubr.bf16.gmra.mxu0 %v1719
      %v1775 = vpop.f32.mrf.mxu0
      %v1776 = vadd.f32 %v1689, %v1775
      %v1777 = vpop.f32.mrf.mxu0
      %v1778 = vadd.f32 %v1689, %v1777
      %v1779 = vpop.f32.mrf.mxu0
      %v1780 = vadd.f32 %v1694, %v1779
      %v1781 = vpop.f32.mrf.mxu0
      %v1782 = vadd.f32 %v1694, %v1781
      %1783 = vmatprep.mubr.bf16.mxu0 0
      %1784 = vmatmul.mubr.bf16.gmra.mxu0 %v1722
      %v1785 = vpop.f32.mrf.mxu0
      %v1786 = vadd.f32 %v1699, %v1785
      %v1787 = vpop.f32.mrf.mxu0
      %v1788 = vadd.f32 %v1699, %v1787
      %v1789 = vpop.f32.mrf.mxu0
      %v1790 = vpop.f32.mrf.mxu0
      %1791 = vdwg.mxu0
      %1792 = vst [vmem:[%s206] sm:$0xff] %v1766
      %1793 = vst [vmem:[%s206 + $0x8] sm:$0xff] %v1768
      %1794 = vst [vmem:[%s206 + $0x10] sm:$0xff] %v1770
      %1795 = vst [vmem:[%s206 + $0x18] sm:$0xff] %v1772
      %1796 = vst [vmem:[%s206 + $0x20] sm:$0x3] %v1776
      %1797 = vst [vmem:[%s206 + $0x28] sm:$0x3] %v1778
      %v1798 = vxor.u32 %v1776, 2147483648
      %v1799 = vxor.u32 %v1778, 2147483648
      %v1800 = vxor.u32 %v1780, 2147483648
      %v1801 = vxor.u32 %v1782, 2147483648
      %v1802 = vxor.u32 %v1786, 2147483648
      %v1803 = vxor.u32 %v1788, 2147483648
      %v1804 = vmul.f32 %v1798, 1.442695
      %v1805 = vpow.pop %v1804
      %v1806 = vmul.f32 %v1799, 1.442695
      %v1807 = vpow.pop %v1806
      %v1808 = vmul.f32 %v1800, 1.442695
      %v1809 = vpow.pop %v1808
      %v1810 = vmul.f32 %v1801, 1.442695
      %v1811 = vpow.pop %v1810
      %v1812 = vmul.f32 %v1802, 1.442695
      %v1813 = vpow.pop %v1812
      %v1814 = vmul.f32 %v1803, 1.442695
      %v1815 = vpow.pop %v1814
      %v1816 = vadd.f32 %v1805, 1.0
      %v1817 = vadd.f32 %v1807, 1.0
      %v1818 = vadd.f32 %v1809, 1.0
      %v1819 = vadd.f32 %v1811, 1.0
      %v1820 = vadd.f32 %v1813, 1.0
      %v1821 = vadd.f32 %v1815, 1.0
      %v1822 = vrcp.pop %v1816
      %v1823 = vmul.f32 1.0, %v1822
      %v1824 = vrcp.pop %v1817
      %v1825 = vmul.f32 1.0, %v1824
      %v1826 = vrcp.pop %v1818
      %v1827 = vmul.f32 1.0, %v1826
      %v1828 = vrcp.pop %v1819
      %v1829 = vmul.f32 1.0, %v1828
      %v1830 = vrcp.pop %v1820
      %v1831 = vmul.f32 1.0, %v1830
      %v1832 = vrcp.pop %v1821
      %v1833 = vmul.f32 1.0, %v1832
      %1834 = vst [vmem:[%s206 + $0x20] sm:$0xfc] %v1823
      %1835 = vst [vmem:[%s206 + $0x28] sm:$0xfc] %v1825
      %1836 = vst [vmem:[%s206 + $0x30] sm:$0xff] %v1827
      %1837 = vst [vmem:[%s206 + $0x38] sm:$0xff] %v1829
      %1838 = vst [vmem:[%s206 + $0x40] sm:$0xf] %v1831
      %1839 = vst [vmem:[%s206 + $0x48] sm:$0xf] %v1833
      %v1840 = vmul.f32 %v1766, %v1766
      %v1841 = vmul.f32 %v1768, %v1768
      %v1842 = vmul.f32 %v1770, %v1770
      %v1843 = vmul.f32 %v1772, %v1772
      %v1844 = vmul.f32 %v1776, %v1776
      %v1845 = vmul.f32 %v1778, %v1778
      %vm1850 = vcmask 1046528
      %v1851 = vrot.slane %v1842, 1
      %v1852 = vrot.slane %v1844, 1
      %v1853 = vsel %vm1850, %v1851, %v1852
      %v1854 = vrot.slane %v1843, 1
      %v1855 = vrot.slane %v1845, 1
      %v1856 = vsel %vm1850, %v1854, %v1855
      %v1861 = vadd.f32 %v1840, %v1853
      %v1862 = vadd.f32 %v1841, %v1856
      %v1863 = vadd.f32 %v1842, %v1852
      %v1864 = vadd.f32 %v1843, %v1855
      %vm1865 = vcmp.lt.f32.partialorder %v1861, 0.25
      %vm1866 = vcmp.lt.f32.partialorder %v1862, 0.25
      %vm1867 = vcmp.lt.f32.partialorder %v1863, 0.25
      %vm1868 = vcmp.lt.f32.partialorder %v1864, 0.25
      %v1869 = vsel %vm1865, 1, 0
      %v1870 = vsel %vm1866, 1, 0
      %v1871 = vsel %vm1867, 1, 0
      %v1872 = vsel %vm1868, 1, 0
      %v1873 = vcvt.s32.f32 %v1869
      %v1874 = vcvt.s32.f32 %v1870
      %v1875 = vcvt.s32.f32 %v1871
      %v1876 = vcvt.s32.f32 %v1872
      %v1881 = vrot.slane %v1873, 4
      %v1882 = vrot.slane %v1874, 4
      %v1883 = vrot.slane %v1875, 4
      %v1884 = vsel %vm513, %v1881, %v1883
      %v1885 = vrot.slane %v1876, 4
      %v1886 = vsel %vm513, %v1882, %v1885
      %1891 = vst [vmem:[%s206 + $0x40] sm:$0xf0] %v1881
      %1892 = vst [vmem:[%s206 + $0x48] sm:$0xf0] %v1882
      %1893 = vst [vmem:[%s206 + $0x50] sm:$0x1f] %v1884
      %1894 = vst [vmem:[%s206 + $0x58] sm:$0x1f] %v1886
      %p1895 = scmp.lt.s32.totalorder %s18, 1
      %s1896 = scalar_select %p1895, %s18, 1
      %s1897 = smul.addr %s1896, 12
      %s1898 = smul.addr %s1897, 8
      %s1899 = scalar_lea.vmem %s7, %s1898
      // Predicated region
      $region185: #{tpu_custom_call.1} parent=39 // pred_check
        %p1900 = pneg %p141
      $region186: #{tpu_custom_call.1} parent=39 // pred_check_branch
        %1902 = sbr.rel (%p1900) target = $region188
      $region187: #{tpu_custom_call.1} parent=39 // pred_region
        _
      $region188: #{tpu_custom_call.1} parent=39 // pred_fallthru
        _
    $region40: #{tpu_custom_call.1} parent=5 // pred_fallthru
      _
    %p1903 = scmp.le.s32.totalorder 2, %s13
    // Predicated region
    $region189: #{tpu_custom_call.1} parent=5 // pred_check
      %p1904 = pneg %p1903
    $region190: #{tpu_custom_call.1} parent=5 // pred_check_branch
      %1906 = sbr.rel (%p1904) target = $region192
    $region191: #{tpu_custom_call.1} parent=5 // pred_region
      %s1907 = ssub.s32 %s13, 2
      // Predicated region
      $region193: #{tpu_custom_call.1} parent=191 // pred_check
        %p1908 = pneg %p147
      $region194: #{tpu_custom_call.1} parent=191 // pred_check_branch
        %1910 = sbr.rel (%p1908) target = $region196
      $region195: #{tpu_custom_call.1} parent=191 // pred_region
        %p1911 = scmp.lt.s32.totalorder %s19, 1
        %s1912 = scalar_select %p1911, %s19, 1
        %s1913 = smul.addr %s1912, 12
        %s1914 = smul.addr %s1913, 8
        %s1915 = scalar_lea.vmem %s7, %s1914
      $region196: #{tpu_custom_call.1} parent=191 // pred_fallthru
        _
    $region192: #{tpu_custom_call.1} parent=5 // pred_fallthru
      _
  $region6: #{tpu_custom_call.1} parent=0 // loop_footer
    %s17 = sadd.s32 1, %s13
  $region7: #{tpu_custom_call.1} parent=0 // loop_footer_branch
    %12 = sbr.rel target = $region3
  $region8: #{tpu_custom_call.1} parent=0 // loop_exit
    _
  %1916 = vsyncmov [#allocation4]
  %s1917 = vpop.sfrf %1916
  %p1918 = scmp.eq.s32.totalorder %s1917, 0
  %p1919 = pneg %p1918
  %1921 = shalt.err (%p1919)
  %s1922 = scalar_lea.sflag [#allocation4], 1
  %1923 = vsyncmov %s1922
  %s1924 = vpop.sfrf %1923
  %p1925 = scmp.eq.s32.totalorder %s1924, 0
  %p1926 = pneg %p1925
  %1928 = shalt.err (%p1926)
  %s1929 = scalar_lea.sflag [#allocation4], 2
  %1930 = vsyncmov %s1929
  %s1931 = vpop.sfrf %1930
  %p1932 = scmp.eq.s32.totalorder %s1931, 0
  %p1933 = pneg %p1932
  %1935 = shalt.err (%p1933)
  %s1936 = scalar_lea.sflag [#allocation4], 3
  %1937 = vsyncmov %s1936
  %s1938 = vpop.sfrf %1937
  %p1939 = scmp.eq.s32.totalorder %s1938, 0
  %p1940 = pneg %p1939
  %1942 = shalt.err (%p1940)

</llo_original>
